<compile_context>
chip_gen: v7x
topology: tpu7x:2x2x1
jax: 0.10.0
libtpu: 0.0.40
codegen_flags: <defaults>
</compile_context>

<pallas_src>
import math
import jax
import jax.numpy as jnp
import numpy as np
from jax.experimental import pallas as pl
from jax.experimental.pallas import tpu as pltpu

EPS = 1e-6


def _layer_norm(x, a, b):
    # Matches the PyTorch LayerNorm in the module: torch.std is unbiased (N-1),
    # and eps is added to the std (not the variance).
    mean = jnp.mean(x, axis=-1, keepdims=True)
    var = jnp.sum((x - mean) ** 2, axis=-1, keepdims=True) / (x.shape[-1] - 1)
    std = jnp.sqrt(var)
    return a * (x - mean) / (std + EPS) + b


# -----------------------------------------------------------------------------
# Fused encoder kernel: one grid step = one (batch, layer) pair.
# -----------------------------------------------------------------------------
def make_fused_encoder_kernel(num_heads, d_k, d_model):
    scale = 1.0 / math.sqrt(d_k)

    def kernel(x_ref, mask_ref,
               wqkv_ref, bqkv_ref, wo_ref, bo_ref,
               w1_ref, b1_ref, w2_ref, b2_ref,
               ln_ref, fnorm_ref, out_ref):
        layer = pl.program_id(1)

        # Layer 0: seed the resident activation (output block is revisited
        # across the layer axis, so it acts as the VMEM-resident carry).
        @pl.when(layer == 0)
        def _():
            out_ref[0] = x_ref[0]

        x = out_ref[0].astype(jnp.float32)         # (S, D) resident activation
        m = mask_ref[0]                            # (1, S), 1.0 keep / 0.0 drop
        neg = (m - 1.0) * 1e9                      # additive mask, hoisted once

        ln = ln_ref[0]                             # (4, D): ln1a, ln1b, ln2a, ln2b
        ln1a, ln1b = ln[0:1, :], ln[1:2, :]
        ln2a, ln2b = ln[2:3, :], ln[3:4, :]

        # ---- sublayer 1: x + SelfAttention(LayerNorm(x)) (dropout = identity) ----
        xn = _layer_norm(x, ln1a, ln1b)
        qkv = (jnp.dot(xn, wqkv_ref[0], preferred_element_type=jnp.float32)
               + bqkv_ref[0])                      # fused QKV: one (S, 3D) matmul
        q = qkv[:, 0:d_model]
        k = qkv[:, d_model:2 * d_model]
        v = qkv[:, 2 * d_model:3 * d_model]

        heads = []
        for h in range(num_heads):                 # static unroll over heads
            sl = slice(h * d_k, (h + 1) * d_k)
            qh, kh, vh = q[:, sl], k[:, sl], v[:, sl]
            s = jnp.dot(qh, kh.T, preferred_element_type=jnp.float32) * scale + neg
            s = s - jnp.max(s, axis=-1, keepdims=True)
            p = jnp.exp(s)
            p = p * pl.reciprocal(jnp.sum(p, axis=-1, keepdims=True), approx=True)
            heads.append(jnp.dot(p, vh, preferred_element_type=jnp.float32))
        # Merge heads once, lane-dense, straight into the output projection
        # (no VMEM scratch, no narrow masked stores).
        attn = jnp.concatenate(heads, axis=-1)     # (S, D)
        x1 = x + (jnp.dot(attn, wo_ref[0], preferred_element_type=jnp.float32)
                  + bo_ref[0])

        # ---- sublayer 2: x1 + FFN(LayerNorm(x1)) (dropout = identity) ----
        xn2 = _layer_norm(x1, ln2a, ln2b)
        hmid = jnp.maximum(
            jnp.dot(xn2, w1_ref[0], preferred_element_type=jnp.float32) + b1_ref[0],
            0.0)
        x2 = x1 + (jnp.dot(hmid, w2_ref[0], preferred_element_type=jnp.float32)
                   + b2_ref[0])

        # Carry activation to the next layer; fold the encoder's final LayerNorm
        # into the last-layer epilogue.
        out_ref[0] = x2.astype(out_ref.dtype)

        @pl.when(layer == pl.num_programs(1) - 1)
        def _():
            out_ref[0] = _layer_norm(x2, fnorm_ref[0:1, :],
                                     fnorm_ref[1:2, :]).astype(out_ref.dtype)

    return kernel


# -----------------------------------------------------------------------------
# Wrapper
# -----------------------------------------------------------------------------
def encoder_forward(x, mask, packed, num_heads):
    B, S, D = x.shape
    L = packed["wqkv"].shape[0]
    d_k = D // num_heads
    kernel = make_fused_encoder_kernel(num_heads, d_k, D)

    def layer_spec(arr):   # layer-indexed weight block, pipeline-prefetched
        return pl.BlockSpec((1,) + arr.shape[1:], lambda b, l: (l, 0, 0))

    in_specs = [
        pl.BlockSpec((1, S, D), lambda b, l: (b, 0, 0)),   # x (embedded src)
        pl.BlockSpec((1, 1, S), lambda b, l: (b, 0, 0)),   # mask
        layer_spec(packed["wqkv"]), layer_spec(packed["bqkv"]),
        layer_spec(packed["wo"]),   layer_spec(packed["bo"]),
        layer_spec(packed["w1"]),   layer_spec(packed["b1"]),
        layer_spec(packed["w2"]),   layer_spec(packed["b2"]),
        layer_spec(packed["ln"]),
        pl.BlockSpec((2, D), lambda b, l: (0, 0)),         # final norm (a, b)
    ]

    return pl.pallas_call(
        kernel,
        out_shape=jax.ShapeDtypeStruct((B, S, D), x.dtype),
        grid=(B, L),
        in_specs=in_specs,
        out_specs=pl.BlockSpec((1, S, D), lambda b, l: (b, 0, 0)),
        compiler_params=pltpu.CompilerParams(
            dimension_semantics=("parallel", "arbitrary"),
            vmem_limit_bytes=32 * 1024 * 1024),
    )(x, mask, packed["wqkv"], packed["bqkv"], packed["wo"], packed["bo"],
      packed["w1"], packed["b1"], packed["w2"], packed["b2"],
      packed["ln"], packed["fnorm"])


def encoder_decoder_forward(src, src_mask, params, packed, num_heads):
    # src_embed: Embeddings(d_model, vocab) => lut(src) * sqrt(d_model)
    # TODO(synk): token-embedding gather is done in plain JAX (jnp.take); a
    # scalar-prefetch row-gather Pallas kernel is not worthwhile at these sizes.
    embed = params["embed"]
    D = embed.shape[1]
    x = jnp.take(embed, src, axis=0) * math.sqrt(D)
    return encoder_forward(x, src_mask, packed, num_heads)


# -----------------------------------------------------------------------------
# Parameter packing: stack per-layer weights with a leading L dim, fuse QKV.
# -----------------------------------------------------------------------------
def pack_encoder_params(params):
    layers = params["layers"]
    return dict(
        wqkv=jnp.stack([jnp.concatenate([lp["wq"], lp["wk"], lp["wv"]], axis=1)
                        for lp in layers]),                       # (L, D, 3D)
        bqkv=jnp.stack([jnp.concatenate([lp["bq"], lp["bk"], lp["bv"]], axis=1)
                        for lp in layers]),                       # (L, 1, 3D)
        wo=jnp.stack([lp["wo"] for lp in layers]),                # (L, D, D)
        bo=jnp.stack([lp["bo"] for lp in layers]),                # (L, 1, D)
        w1=jnp.stack([lp["w1"] for lp in layers]),                # (L, D, Dff)
        b1=jnp.stack([lp["b1"] for lp in layers]),                # (L, 1, Dff)
        w2=jnp.stack([lp["w2"] for lp in layers]),                # (L, Dff, D)
        b2=jnp.stack([lp["b2"] for lp in layers]),                # (L, 1, D)
        ln=jnp.stack([jnp.concatenate([lp["ln1a"], lp["ln1b"],
                                       lp["ln2a"], lp["ln2b"]], axis=0)
                      for lp in layers]),                         # (L, 4, D)
        fnorm=jnp.concatenate([params["norm_a"], params["norm_b"]], axis=0),  # (2, D)
    )


# -----------------------------------------------------------------------------
# Pure-JAX reference (mirrors PyTorch semantics) for correctness check
# -----------------------------------------------------------------------------
def reference_encoder_decoder(src, src_mask, params, num_heads):
    embed = params["embed"]
    D = embed.shape[1]
    x = embed[src] * math.sqrt(D)
    B, S, _ = x.shape
    d_k = D // num_heads
    scale = 1.0 / math.sqrt(d_k)

    def split_heads(t):
        return t.reshape(B, S, num_heads, d_k).transpose(0, 2, 1, 3)

    for lp in params["layers"]:
        xn = _layer_norm(x, lp["ln1a"], lp["ln1b"])
        q = split_heads(xn @ lp["wq"] + lp["bq"])
        k = split_heads(xn @ lp["wk"] + lp["bk"])
        v = split_heads(xn @ lp["wv"] + lp["bv"])
        s = jnp.einsum("bhqd,bhkd->bhqk", q, k) * scale
        s = jnp.where(src_mask[:, None, :, :] == 0.0, -1e9, s)
        p = jax.nn.softmax(s, axis=-1)
        o = jnp.einsum("bhqk,bhkd->bhqd", p, v).transpose(0, 2, 1, 3).reshape(B, S, D)
        x = x + (o @ lp["wo"] + lp["bo"])
        xn2 = _layer_norm(x, lp["ln2a"], lp["ln2b"])
        hmid = jnp.maximum(xn2 @ lp["w1"] + lp["b1"], 0.0)
        x = x + (hmid @ lp["w2"] + lp["b2"])
    return _layer_norm(x, params["norm_a"], params["norm_b"])


# -----------------------------------------------------------------------------
# Deterministic parameter init
# -----------------------------------------------------------------------------
def init_params(key, vocab, D, d_ff, n_layers):
    def linear(k, din, dout):
        kw, kb = jax.random.split(k)
        w = jax.random.normal(kw, (din, dout), jnp.float32) / math.sqrt(din)
        b = jax.random.normal(kb, (1, dout), jnp.float32) * 0.01
        return w, b

    layers = []
    for i in range(n_layers):
        ks = jax.random.split(jax.random.fold_in(key, i), 6)
        wq, bq = linear(ks[0], D, D)
        wk, bk = linear(ks[1], D, D)
        wv, bv = linear(ks[2], D, D)
        wo, bo = linear(ks[3], D, D)
        w1, b1 = linear(ks[4], D, d_ff)
        w2, b2 = linear(ks[5], d_ff, D)
        layers.append(dict(
            wq=wq, bq=bq, wk=wk, bk=bk, wv=wv, bv=bv, wo=wo, bo=bo,
            w1=w1, b1=b1, w2=w2, b2=b2,
            ln1a=jnp.ones((1, D), jnp.float32), ln1b=jnp.zeros((1, D), jnp.float32),
            ln2a=jnp.ones((1, D), jnp.float32), ln2b=jnp.zeros((1, D), jnp.float32),
        ))
    kemb = jax.random.fold_in(key, 12345)
    embed = jax.random.normal(kemb, (vocab, D), jnp.float32) / math.sqrt(D)
    return dict(embed=embed, layers=layers,
                norm_a=jnp.ones((1, D), jnp.float32),
                norm_b=jnp.zeros((1, D), jnp.float32))


if __name__ == "__main__":
    B, S, D = 2, 8, 32        # batch, seq, d_model
    H, D_FF, N_LAYERS, VOCAB = 4, 64, 2, 20

    key = jax.random.PRNGKey(0)
    ks, kp = jax.random.split(key)

    # token ids; id 0 is padding (batch 1 has its last 2 positions padded)
    src = jax.random.randint(ks, (B, S), 1, VOCAB)
    src = src.at[1, S - 2:].set(0)
    src_mask = (src != 0).astype(jnp.float32)[:, None, :]   # (B, 1, S)

    params = init_params(kp, VOCAB, D, D_FF, N_LAYERS)
    packed = pack_encoder_params(params)

    out = encoder_decoder_forward(src, src_mask, params, packed, H)
    out = jax.block_until_ready(out)

    ref = reference_encoder_decoder(src, src_mask, params, H)
    # Tolerance accounts for the EUP approximate-reciprocal softmax denominator.
    np.testing.assert_allclose(np.asarray(out), np.asarray(ref),
                               rtol=5e-3, atol=5e-3)

    print("KERNEL_OK")
</pallas_src>

<mosaic_0001>
module attributes {stable_mosaic.version = 11 : i64} {
  func.func @kernel(%arg0: i32, %arg1: i32, %arg2: memref<1x8x32xf32, #tpu.memory_space<vmem>>, %arg3: memref<1x1x8xf32, #tpu.memory_space<vmem>>, %arg4: memref<1x32x96xf32, #tpu.memory_space<vmem>>, %arg5: memref<1x1x96xf32, #tpu.memory_space<vmem>>, %arg6: memref<1x32x32xf32, #tpu.memory_space<vmem>>, %arg7: memref<1x1x32xf32, #tpu.memory_space<vmem>>, %arg8: memref<1x32x64xf32, #tpu.memory_space<vmem>>, %arg9: memref<1x1x64xf32, #tpu.memory_space<vmem>>, %arg10: memref<1x64x32xf32, #tpu.memory_space<vmem>>, %arg11: memref<1x1x32xf32, #tpu.memory_space<vmem>>, %arg12: memref<1x4x32xf32, #tpu.memory_space<vmem>>, %arg13: memref<2x32xf32, #tpu.memory_space<vmem>>, %arg14: memref<1x8x32xf32, #tpu.memory_space<vmem>>) attributes {dimension_semantics = [#tpu.dimension_semantics<parallel>, #tpu.dimension_semantics<arbitrary>], iteration_bounds = array<i64: 2, 2>, scalar_prefetch = 0 : i64, scratch_operands = 0 : i64, tpu.core_type = #tpu.core_type<tc>, window_params = [{transform_indices = @transform_0, window_bounds = array<i64: 1, 8, 32>}, {transform_indices = @transform_1, window_bounds = array<i64: 1, 1, 8>}, {transform_indices = @transform_2, window_bounds = array<i64: 1, 32, 96>}, {transform_indices = @transform_3, window_bounds = array<i64: 1, 1, 96>}, {transform_indices = @transform_4, window_bounds = array<i64: 1, 32, 32>}, {transform_indices = @transform_5, window_bounds = array<i64: 1, 1, 32>}, {transform_indices = @transform_6, window_bounds = array<i64: 1, 32, 64>}, {transform_indices = @transform_7, window_bounds = array<i64: 1, 1, 64>}, {transform_indices = @transform_8, window_bounds = array<i64: 1, 64, 32>}, {transform_indices = @transform_9, window_bounds = array<i64: 1, 1, 32>}, {transform_indices = @transform_10, window_bounds = array<i64: 1, 4, 32>}, {pipeline_mode = #tpu.pipeline_mode<synchronous>, transform_indices = @transform_11, window_bounds = array<i64: 2, 32>}, {transform_indices = @transform_12, window_bounds = array<i64: 1, 8, 32>}]} {
    %c0_i32 = arith.constant 0 : i32
    %0 = arith.cmpi eq, %arg1, %c0_i32 : i32
    %1 = arith.extui %0 : i1 to i32
    %c0_i32_0 = arith.constant 0 : i32
    %2 = arith.cmpi ne, %1, %c0_i32_0 : i32
    scf.if %2 {
      %c0_73 = arith.constant 0 : index
      %c0_74 = arith.constant 0 : index
      %c0_75 = arith.constant 0 : index
      %183 = vector.load %arg2[%c0_73, %c0_74, %c0_75] : memref<1x8x32xf32, #tpu.memory_space<vmem>>, vector<1x8x32xf32>
      %184 = vector.shape_cast %183 : vector<1x8x32xf32> to vector<8x32xf32>
      %c0_76 = arith.constant 0 : index
      %c0_77 = arith.constant 0 : index
      %c0_78 = arith.constant 0 : index
      %185 = vector.load %arg14[%c0_76, %c0_77, %c0_78] : memref<1x8x32xf32, #tpu.memory_space<vmem>>, vector<1x8x32xf32>
      %186 = vector.shape_cast %185 : vector<1x8x32xf32> to vector<8x32xf32>
      %187 = vector.shape_cast %184 : vector<8x32xf32> to vector<1x8x32xf32>
      tpu.vector_store %arg14[%c0_76, %c0_77, %c0_78], %187 {strides = array<i32>} : memref<1x8x32xf32, #tpu.memory_space<vmem>>, vector<1x8x32xf32>,
    } else {
    }
    %c0 = arith.constant 0 : index
    %c0_1 = arith.constant 0 : index
    %c0_2 = arith.constant 0 : index
    %3 = vector.load %arg14[%c0, %c0_1, %c0_2] : memref<1x8x32xf32, #tpu.memory_space<vmem>>, vector<1x8x32xf32>
    %4 = vector.shape_cast %3 : vector<1x8x32xf32> to vector<8x32xf32>
    %c0_3 = arith.constant 0 : index
    %c0_4 = arith.constant 0 : index
    %c0_5 = arith.constant 0 : index
    %5 = vector.load %arg3[%c0_3, %c0_4, %c0_5] : memref<1x1x8xf32, #tpu.memory_space<vmem>>, vector<1x1x8xf32>
    %6 = vector.shape_cast %5 : vector<1x1x8xf32> to vector<1x8xf32>
    %cst = arith.constant 1.000000e+00 : f32
    %7 = vector.broadcast %cst : f32 to vector<1x8xf32>
    %8 = arith.subf %6, %7 : vector<1x8xf32>
    %cst_6 = arith.constant 1.000000e+09 : f32
    %9 = vector.broadcast %cst_6 : f32 to vector<1x8xf32>
    %10 = arith.mulf %8, %9 : vector<1x8xf32>
    %c0_7 = arith.constant 0 : index
    %c0_8 = arith.constant 0 : index
    %c0_9 = arith.constant 0 : index
    %11 = vector.load %arg12[%c0_7, %c0_8, %c0_9] : memref<1x4x32xf32, #tpu.memory_space<vmem>>, vector<1x4x32xf32>
    %12 = vector.shape_cast %11 : vector<1x4x32xf32> to vector<4x32xf32>
    %13 = vector.extract_strided_slice %12 {offsets = [0, 0], sizes = [1, 32], strides = [1, 1]} : vector<4x32xf32> to vector<1x32xf32>
    %14 = vector.extract_strided_slice %12 {offsets = [1, 0], sizes = [1, 32], strides = [1, 1]} : vector<4x32xf32> to vector<1x32xf32>
    %15 = vector.extract_strided_slice %12 {offsets = [2, 0], sizes = [1, 32], strides = [1, 1]} : vector<4x32xf32> to vector<1x32xf32>
    %16 = vector.extract_strided_slice %12 {offsets = [3, 0], sizes = [1, 32], strides = [1, 1]} : vector<4x32xf32> to vector<1x32xf32>
    %cst_10 = arith.constant dense<0.000000e+00> : vector<8xf32>
    %17 = vector.multi_reduction <add>, %4, %cst_10 [1] : vector<8x32xf32> to vector<8xf32>
    %18 = vector.shape_cast %17 : vector<8xf32> to vector<8x1xf32>
    %cst_11 = arith.constant 3.200000e+01 : f32
    %19 = vector.broadcast %cst_11 : f32 to vector<8x1xf32>
    %20 = arith.divf %18, %19 : vector<8x1xf32>
    %21 = vector.broadcast %20 : vector<8x1xf32> to vector<8x32xf32>
    %22 = arith.subf %4, %21 : vector<8x32xf32>
    %23 = arith.mulf %22, %22 : vector<8x32xf32>
    %cst_12 = arith.constant dense<0.000000e+00> : vector<8xf32>
    %24 = vector.multi_reduction <add>, %23, %cst_12 [1] : vector<8x32xf32> to vector<8xf32>
    %25 = vector.shape_cast %24 : vector<8xf32> to vector<8x1xf32>
    %cst_13 = arith.constant 3.100000e+01 : f32
    %26 = vector.broadcast %cst_13 : f32 to vector<8x1xf32>
    %27 = arith.divf %25, %26 : vector<8x1xf32>
    %28 = math.sqrt %27 : vector<8x1xf32>
    %29 = vector.broadcast %20 : vector<8x1xf32> to vector<8x32xf32>
    %30 = arith.subf %4, %29 : vector<8x32xf32>
    %31 = vector.broadcast %13 : vector<1x32xf32> to vector<8x32xf32>
    %32 = arith.mulf %31, %30 : vector<8x32xf32>
    %cst_14 = arith.constant 9.99999997E-7 : f32
    %33 = vector.broadcast %cst_14 : f32 to vector<8x1xf32>
    %34 = arith.addf %28, %33 : vector<8x1xf32>
    %35 = vector.broadcast %34 : vector<8x1xf32> to vector<8x32xf32>
    %36 = arith.divf %32, %35 : vector<8x32xf32>
    %37 = vector.broadcast %14 : vector<1x32xf32> to vector<8x32xf32>
    %38 = arith.addf %36, %37 : vector<8x32xf32>
    %c0_15 = arith.constant 0 : index
    %c0_16 = arith.constant 0 : index
    %c0_17 = arith.constant 0 : index
    %39 = vector.load %arg4[%c0_15, %c0_16, %c0_17] : memref<1x32x96xf32, #tpu.memory_space<vmem>>, vector<1x32x96xf32>
    %40 = vector.shape_cast %39 : vector<1x32x96xf32> to vector<32x96xf32>
    %cst_18 = arith.constant dense<0.000000e+00> : vector<8x96xf32>
    %41 = tpu.matmul %38, %40, %cst_18 {dimension_numbers = #tpu.dot_dimension_numbers<[1], [0], [0], [1], [0, 0, 1, 1], [], []>} : vector<8x32xf32>, vector<32x96xf32>, vector<8x96xf32> -> vector<8x96xf32>
    %c0_19 = arith.constant 0 : index
    %c0_20 = arith.constant 0 : index
    %c0_21 = arith.constant 0 : index
    %42 = vector.load %arg5[%c0_19, %c0_20, %c0_21] : memref<1x1x96xf32, #tpu.memory_space<vmem>>, vector<1x1x96xf32>
    %43 = vector.shape_cast %42 : vector<1x1x96xf32> to vector<1x96xf32>
    %44 = vector.broadcast %43 : vector<1x96xf32> to vector<8x96xf32>
    %45 = arith.addf %41, %44 : vector<8x96xf32>
    %46 = vector.extract_strided_slice %45 {offsets = [0, 0], sizes = [8, 32], strides = [1, 1]} : vector<8x96xf32> to vector<8x32xf32>
    %47 = vector.extract_strided_slice %45 {offsets = [0, 32], sizes = [8, 32], strides = [1, 1]} : vector<8x96xf32> to vector<8x32xf32>
    %48 = vector.extract_strided_slice %45 {offsets = [0, 64], sizes = [8, 32], strides = [1, 1]} : vector<8x96xf32> to vector<8x32xf32>
    %49 = vector.extract_strided_slice %46 {offsets = [0, 0], sizes = [8, 8], strides = [1, 1]} : vector<8x32xf32> to vector<8x8xf32>
    %50 = vector.extract_strided_slice %47 {offsets = [0, 0], sizes = [8, 8], strides = [1, 1]} : vector<8x32xf32> to vector<8x8xf32>
    %51 = vector.extract_strided_slice %48 {offsets = [0, 0], sizes = [8, 8], strides = [1, 1]} : vector<8x32xf32> to vector<8x8xf32>
    %52 = tpu.transpose %50, [1, 0] : vector<8x8xf32> -> vector<8x8xf32>
    %cst_22 = arith.constant dense<0.000000e+00> : vector<8x8xf32>
    %53 = tpu.matmul %49, %52, %cst_22 {dimension_numbers = #tpu.dot_dimension_numbers<[1], [0], [0], [1], [0, 0, 1, 1], [], []>} : vector<8x8xf32>, vector<8x8xf32>, vector<8x8xf32> -> vector<8x8xf32>
    %cst_23 = arith.constant 0.353553385 : f32
    %54 = vector.broadcast %cst_23 : f32 to vector<8x8xf32>
    %55 = arith.mulf %53, %54 : vector<8x8xf32>
    %56 = vector.broadcast %10 : vector<1x8xf32> to vector<8x8xf32>
    %57 = arith.addf %55, %56 : vector<8x8xf32>
    %cst_24 = arith.constant dense<0xFF800000> : vector<8xf32>
    %58 = vector.multi_reduction <maximumf>, %57, %cst_24 [1] : vector<8x8xf32> to vector<8xf32>
    %59 = vector.shape_cast %58 : vector<8xf32> to vector<8x1xf32>
    %60 = vector.broadcast %59 : vector<8x1xf32> to vector<8x8xf32>
    %61 = arith.subf %57, %60 : vector<8x8xf32>
    %62 = math.exp %61 : vector<8x8xf32>
    %cst_25 = arith.constant dense<0.000000e+00> : vector<8xf32>
    %63 = vector.multi_reduction <add>, %62, %cst_25 [1] : vector<8x8xf32> to vector<8xf32>
    %64 = vector.shape_cast %63 : vector<8xf32> to vector<8x1xf32>
    %65 = tpu.reciprocal %64 {approx = true} : vector<8x1xf32> -> vector<8x1xf32>
    %66 = vector.broadcast %65 : vector<8x1xf32> to vector<8x8xf32>
    %67 = arith.mulf %62, %66 : vector<8x8xf32>
    %cst_26 = arith.constant dense<0.000000e+00> : vector<8x8xf32>
    %68 = tpu.matmul %67, %51, %cst_26 {dimension_numbers = #tpu.dot_dimension_numbers<[1], [0], [0], [1], [0, 0, 1, 1], [], []>} : vector<8x8xf32>, vector<8x8xf32>, vector<8x8xf32> -> vector<8x8xf32>
    %69 = vector.extract_strided_slice %46 {offsets = [0, 8], sizes = [8, 8], strides = [1, 1]} : vector<8x32xf32> to vector<8x8xf32>
    %70 = vector.extract_strided_slice %47 {offsets = [0, 8], sizes = [8, 8], strides = [1, 1]} : vector<8x32xf32> to vector<8x8xf32>
    %71 = vector.extract_strided_slice %48 {offsets = [0, 8], sizes = [8, 8], strides = [1, 1]} : vector<8x32xf32> to vector<8x8xf32>
    %72 = tpu.transpose %70, [1, 0] : vector<8x8xf32> -> vector<8x8xf32>
    %cst_27 = arith.constant dense<0.000000e+00> : vector<8x8xf32>
    %73 = tpu.matmul %69, %72, %cst_27 {dimension_numbers = #tpu.dot_dimension_numbers<[1], [0], [0], [1], [0, 0, 1, 1], [], []>} : vector<8x8xf32>, vector<8x8xf32>, vector<8x8xf32> -> vector<8x8xf32>
    %cst_28 = arith.constant 0.353553385 : f32
    %74 = vector.broadcast %cst_28 : f32 to vector<8x8xf32>
    %75 = arith.mulf %73, %74 : vector<8x8xf32>
    %76 = vector.broadcast %10 : vector<1x8xf32> to vector<8x8xf32>
    %77 = arith.addf %75, %76 : vector<8x8xf32>
    %cst_29 = arith.constant dense<0xFF800000> : vector<8xf32>
    %78 = vector.multi_reduction <maximumf>, %77, %cst_29 [1] : vector<8x8xf32> to vector<8xf32>
    %79 = vector.shape_cast %78 : vector<8xf32> to vector<8x1xf32>
    %80 = vector.broadcast %79 : vector<8x1xf32> to vector<8x8xf32>
    %81 = arith.subf %77, %80 : vector<8x8xf32>
    %82 = math.exp %81 : vector<8x8xf32>
    %cst_30 = arith.constant dense<0.000000e+00> : vector<8xf32>
    %83 = vector.multi_reduction <add>, %82, %cst_30 [1] : vector<8x8xf32> to vector<8xf32>
    %84 = vector.shape_cast %83 : vector<8xf32> to vector<8x1xf32>
    %85 = tpu.reciprocal %84 {approx = true} : vector<8x1xf32> -> vector<8x1xf32>
    %86 = vector.broadcast %85 : vector<8x1xf32> to vector<8x8xf32>
    %87 = arith.mulf %82, %86 : vector<8x8xf32>
    %cst_31 = arith.constant dense<0.000000e+00> : vector<8x8xf32>
    %88 = tpu.matmul %87, %71, %cst_31 {dimension_numbers = #tpu.dot_dimension_numbers<[1], [0], [0], [1], [0, 0, 1, 1], [], []>} : vector<8x8xf32>, vector<8x8xf32>, vector<8x8xf32> -> vector<8x8xf32>
    %89 = vector.extract_strided_slice %46 {offsets = [0, 16], sizes = [8, 8], strides = [1, 1]} : vector<8x32xf32> to vector<8x8xf32>
    %90 = vector.extract_strided_slice %47 {offsets = [0, 16], sizes = [8, 8], strides = [1, 1]} : vector<8x32xf32> to vector<8x8xf32>
    %91 = vector.extract_strided_slice %48 {offsets = [0, 16], sizes = [8, 8], strides = [1, 1]} : vector<8x32xf32> to vector<8x8xf32>
    %92 = tpu.transpose %90, [1, 0] : vector<8x8xf32> -> vector<8x8xf32>
    %cst_32 = arith.constant dense<0.000000e+00> : vector<8x8xf32>
    %93 = tpu.matmul %89, %92, %cst_32 {dimension_numbers = #tpu.dot_dimension_numbers<[1], [0], [0], [1], [0, 0, 1, 1], [], []>} : vector<8x8xf32>, vector<8x8xf32>, vector<8x8xf32> -> vector<8x8xf32>
    %cst_33 = arith.constant 0.353553385 : f32
    %94 = vector.broadcast %cst_33 : f32 to vector<8x8xf32>
    %95 = arith.mulf %93, %94 : vector<8x8xf32>
    %96 = vector.broadcast %10 : vector<1x8xf32> to vector<8x8xf32>
    %97 = arith.addf %95, %96 : vector<8x8xf32>
    %cst_34 = arith.constant dense<0xFF800000> : vector<8xf32>
    %98 = vector.multi_reduction <maximumf>, %97, %cst_34 [1] : vector<8x8xf32> to vector<8xf32>
    %99 = vector.shape_cast %98 : vector<8xf32> to vector<8x1xf32>
    %100 = vector.broadcast %99 : vector<8x1xf32> to vector<8x8xf32>
    %101 = arith.subf %97, %100 : vector<8x8xf32>
    %102 = math.exp %101 : vector<8x8xf32>
    %cst_35 = arith.constant dense<0.000000e+00> : vector<8xf32>
    %103 = vector.multi_reduction <add>, %102, %cst_35 [1] : vector<8x8xf32> to vector<8xf32>
    %104 = vector.shape_cast %103 : vector<8xf32> to vector<8x1xf32>
    %105 = tpu.reciprocal %104 {approx = true} : vector<8x1xf32> -> vector<8x1xf32>
    %106 = vector.broadcast %105 : vector<8x1xf32> to vector<8x8xf32>
    %107 = arith.mulf %102, %106 : vector<8x8xf32>
    %cst_36 = arith.constant dense<0.000000e+00> : vector<8x8xf32>
    %108 = tpu.matmul %107, %91, %cst_36 {dimension_numbers = #tpu.dot_dimension_numbers<[1], [0], [0], [1], [0, 0, 1, 1], [], []>} : vector<8x8xf32>, vector<8x8xf32>, vector<8x8xf32> -> vector<8x8xf32>
    %109 = vector.extract_strided_slice %46 {offsets = [0, 24], sizes = [8, 8], strides = [1, 1]} : vector<8x32xf32> to vector<8x8xf32>
    %110 = vector.extract_strided_slice %47 {offsets = [0, 24], sizes = [8, 8], strides = [1, 1]} : vector<8x32xf32> to vector<8x8xf32>
    %111 = vector.extract_strided_slice %48 {offsets = [0, 24], sizes = [8, 8], strides = [1, 1]} : vector<8x32xf32> to vector<8x8xf32>
    %112 = tpu.transpose %110, [1, 0] : vector<8x8xf32> -> vector<8x8xf32>
    %cst_37 = arith.constant dense<0.000000e+00> : vector<8x8xf32>
    %113 = tpu.matmul %109, %112, %cst_37 {dimension_numbers = #tpu.dot_dimension_numbers<[1], [0], [0], [1], [0, 0, 1, 1], [], []>} : vector<8x8xf32>, vector<8x8xf32>, vector<8x8xf32> -> vector<8x8xf32>
    %cst_38 = arith.constant 0.353553385 : f32
    %114 = vector.broadcast %cst_38 : f32 to vector<8x8xf32>
    %115 = arith.mulf %113, %114 : vector<8x8xf32>
    %116 = vector.broadcast %10 : vector<1x8xf32> to vector<8x8xf32>
    %117 = arith.addf %115, %116 : vector<8x8xf32>
    %cst_39 = arith.constant dense<0xFF800000> : vector<8xf32>
    %118 = vector.multi_reduction <maximumf>, %117, %cst_39 [1] : vector<8x8xf32> to vector<8xf32>
    %119 = vector.shape_cast %118 : vector<8xf32> to vector<8x1xf32>
    %120 = vector.broadcast %119 : vector<8x1xf32> to vector<8x8xf32>
    %121 = arith.subf %117, %120 : vector<8x8xf32>
    %122 = math.exp %121 : vector<8x8xf32>
    %cst_40 = arith.constant dense<0.000000e+00> : vector<8xf32>
    %123 = vector.multi_reduction <add>, %122, %cst_40 [1] : vector<8x8xf32> to vector<8xf32>
    %124 = vector.shape_cast %123 : vector<8xf32> to vector<8x1xf32>
    %125 = tpu.reciprocal %124 {approx = true} : vector<8x1xf32> -> vector<8x1xf32>
    %126 = vector.broadcast %125 : vector<8x1xf32> to vector<8x8xf32>
    %127 = arith.mulf %122, %126 : vector<8x8xf32>
    %cst_41 = arith.constant dense<0.000000e+00> : vector<8x8xf32>
    %128 = tpu.matmul %127, %111, %cst_41 {dimension_numbers = #tpu.dot_dimension_numbers<[1], [0], [0], [1], [0, 0, 1, 1], [], []>} : vector<8x8xf32>, vector<8x8xf32>, vector<8x8xf32> -> vector<8x8xf32>
    %129 = tpu.concatenate %68, %88, %108, %128 in 1 : vector<8x8xf32>, vector<8x8xf32>, vector<8x8xf32>, vector<8x8xf32> -> vector<8x32xf32>
    %c0_42 = arith.constant 0 : index
    %c0_43 = arith.constant 0 : index
    %c0_44 = arith.constant 0 : index
    %130 = vector.load %arg6[%c0_42, %c0_43, %c0_44] : memref<1x32x32xf32, #tpu.memory_space<vmem>>, vector<1x32x32xf32>
    %131 = vector.shape_cast %130 : vector<1x32x32xf32> to vector<32x32xf32>
    %cst_45 = arith.constant dense<0.000000e+00> : vector<8x32xf32>
    %132 = tpu.matmul %129, %131, %cst_45 {dimension_numbers = #tpu.dot_dimension_numbers<[1], [0], [0], [1], [0, 0, 1, 1], [], []>} : vector<8x32xf32>, vector<32x32xf32>, vector<8x32xf32> -> vector<8x32xf32>
    %c0_46 = arith.constant 0 : index
    %c0_47 = arith.constant 0 : index
    %c0_48 = arith.constant 0 : index
    %133 = vector.load %arg7[%c0_46, %c0_47, %c0_48] : memref<1x1x32xf32, #tpu.memory_space<vmem>>, vector<1x1x32xf32>
    %134 = vector.shape_cast %133 : vector<1x1x32xf32> to vector<1x32xf32>
    %135 = vector.broadcast %134 : vector<1x32xf32> to vector<8x32xf32>
    %136 = arith.addf %132, %135 : vector<8x32xf32>
    %137 = arith.addf %4, %136 : vector<8x32xf32>
    %cst_49 = arith.constant dense<0.000000e+00> : vector<8xf32>
    %138 = vector.multi_reduction <add>, %137, %cst_49 [1] : vector<8x32xf32> to vector<8xf32>
    %139 = vector.shape_cast %138 : vector<8xf32> to vector<8x1xf32>
    %cst_50 = arith.constant 3.200000e+01 : f32
    %140 = vector.broadcast %cst_50 : f32 to vector<8x1xf32>
    %141 = arith.divf %139, %140 : vector<8x1xf32>
    %142 = vector.broadcast %141 : vector<8x1xf32> to vector<8x32xf32>
    %143 = arith.subf %137, %142 : vector<8x32xf32>
    %144 = arith.mulf %143, %143 : vector<8x32xf32>
    %cst_51 = arith.constant dense<0.000000e+00> : vector<8xf32>
    %145 = vector.multi_reduction <add>, %144, %cst_51 [1] : vector<8x32xf32> to vector<8xf32>
    %146 = vector.shape_cast %145 : vector<8xf32> to vector<8x1xf32>
    %cst_52 = arith.constant 3.100000e+01 : f32
    %147 = vector.broadcast %cst_52 : f32 to vector<8x1xf32>
    %148 = arith.divf %146, %147 : vector<8x1xf32>
    %149 = math.sqrt %148 : vector<8x1xf32>
    %150 = vector.broadcast %141 : vector<8x1xf32> to vector<8x32xf32>
    %151 = arith.subf %137, %150 : vector<8x32xf32>
    %152 = vector.broadcast %15 : vector<1x32xf32> to vector<8x32xf32>
    %153 = arith.mulf %152, %151 : vector<8x32xf32>
    %cst_53 = arith.constant 9.99999997E-7 : f32
    %154 = vector.broadcast %cst_53 : f32 to vector<8x1xf32>
    %155 = arith.addf %149, %154 : vector<8x1xf32>
    %156 = vector.broadcast %155 : vector<8x1xf32> to vector<8x32xf32>
    %157 = arith.divf %153, %156 : vector<8x32xf32>
    %158 = vector.broadcast %16 : vector<1x32xf32> to vector<8x32xf32>
    %159 = arith.addf %157, %158 : vector<8x32xf32>
    %c0_54 = arith.constant 0 : index
    %c0_55 = arith.constant 0 : index
    %c0_56 = arith.constant 0 : index
    %160 = vector.load %arg8[%c0_54, %c0_55, %c0_56] : memref<1x32x64xf32, #tpu.memory_space<vmem>>, vector<1x32x64xf32>
    %161 = vector.shape_cast %160 : vector<1x32x64xf32> to vector<32x64xf32>
    %cst_57 = arith.constant dense<0.000000e+00> : vector<8x64xf32>
    %162 = tpu.matmul %159, %161, %cst_57 {dimension_numbers = #tpu.dot_dimension_numbers<[1], [0], [0], [1], [0, 0, 1, 1], [], []>} : vector<8x32xf32>, vector<32x64xf32>, vector<8x64xf32> -> vector<8x64xf32>
    %c0_58 = arith.constant 0 : index
    %c0_59 = arith.constant 0 : index
    %c0_60 = arith.constant 0 : index
    %163 = vector.load %arg9[%c0_58, %c0_59, %c0_60] : memref<1x1x64xf32, #tpu.memory_space<vmem>>, vector<1x1x64xf32>
    %164 = vector.shape_cast %163 : vector<1x1x64xf32> to vector<1x64xf32>
    %165 = vector.broadcast %164 : vector<1x64xf32> to vector<8x64xf32>
    %166 = arith.addf %162, %165 : vector<8x64xf32>
    %cst_61 = arith.constant 0.000000e+00 : f32
    %167 = vector.broadcast %cst_61 : f32 to vector<8x64xf32>
    %168 = arith.maximumf %166, %167 : vector<8x64xf32>
    %c0_62 = arith.constant 0 : index
    %c0_63 = arith.constant 0 : index
    %c0_64 = arith.constant 0 : index
    %169 = vector.load %arg10[%c0_62, %c0_63, %c0_64] : memref<1x64x32xf32, #tpu.memory_space<vmem>>, vector<1x64x32xf32>
    %170 = vector.shape_cast %169 : vector<1x64x32xf32> to vector<64x32xf32>
    %cst_65 = arith.constant dense<0.000000e+00> : vector<8x32xf32>
    %171 = tpu.matmul %168, %170, %cst_65 {dimension_numbers = #tpu.dot_dimension_numbers<[1], [0], [0], [1], [0, 0, 1, 1], [], []>} : vector<8x64xf32>, vector<64x32xf32>, vector<8x32xf32> -> vector<8x32xf32>
    %c0_66 = arith.constant 0 : index
    %c0_67 = arith.constant 0 : index
    %c0_68 = arith.constant 0 : index
    %172 = vector.load %arg11[%c0_66, %c0_67, %c0_68] : memref<1x1x32xf32, #tpu.memory_space<vmem>>, vector<1x1x32xf32>
    %173 = vector.shape_cast %172 : vector<1x1x32xf32> to vector<1x32xf32>
    %174 = vector.broadcast %173 : vector<1x32xf32> to vector<8x32xf32>
    %175 = arith.addf %171, %174 : vector<8x32xf32>
    %176 = arith.addf %137, %175 : vector<8x32xf32>
    %c0_69 = arith.constant 0 : index
    %c0_70 = arith.constant 0 : index
    %c0_71 = arith.constant 0 : index
    %177 = vector.load %arg14[%c0_69, %c0_70, %c0_71] : memref<1x8x32xf32, #tpu.memory_space<vmem>>, vector<1x8x32xf32>
    %178 = vector.shape_cast %177 : vector<1x8x32xf32> to vector<8x32xf32>
    %179 = vector.shape_cast %176 : vector<8x32xf32> to vector<1x8x32xf32>
    tpu.vector_store %arg14[%c0_69, %c0_70, %c0_71], %179 {strides = array<i32>} : memref<1x8x32xf32, #tpu.memory_space<vmem>>, vector<1x8x32xf32>,
    %c1_i32 = arith.constant 1 : i32
    %180 = arith.cmpi eq, %arg1, %c1_i32 : i32
    %181 = arith.extui %180 : i1 to i32
    %c0_i32_72 = arith.constant 0 : i32
    %182 = arith.cmpi ne, %181, %c0_i32_72 : i32
    scf.if %182 {
      %c0_73 = arith.constant 0 : index
      %c0_74 = arith.constant 0 : index
      %183 = vector.load %arg13[%c0_73, %c0_74] : memref<2x32xf32, #tpu.memory_space<vmem>>, vector<1x32xf32>
      %c1 = arith.constant 1 : index
      %c0_75 = arith.constant 0 : index
      %184 = vector.load %arg13[%c1, %c0_75] : memref<2x32xf32, #tpu.memory_space<vmem>>, vector<1x32xf32>
      %cst_76 = arith.constant dense<0.000000e+00> : vector<8xf32>
      %185 = vector.multi_reduction <add>, %176, %cst_76 [1] : vector<8x32xf32> to vector<8xf32>
      %186 = vector.shape_cast %185 : vector<8xf32> to vector<8x1xf32>
      %cst_77 = arith.constant 3.200000e+01 : f32
      %187 = vector.broadcast %cst_77 : f32 to vector<8x1xf32>
      %188 = arith.divf %186, %187 : vector<8x1xf32>
      %189 = vector.broadcast %188 : vector<8x1xf32> to vector<8x32xf32>
      %190 = arith.subf %176, %189 : vector<8x32xf32>
      %191 = arith.mulf %190, %190 : vector<8x32xf32>
      %cst_78 = arith.constant dense<0.000000e+00> : vector<8xf32>
      %192 = vector.multi_reduction <add>, %191, %cst_78 [1] : vector<8x32xf32> to vector<8xf32>
      %193 = vector.shape_cast %192 : vector<8xf32> to vector<8x1xf32>
      %cst_79 = arith.constant 3.100000e+01 : f32
      %194 = vector.broadcast %cst_79 : f32 to vector<8x1xf32>
      %195 = arith.divf %193, %194 : vector<8x1xf32>
      %196 = math.sqrt %195 : vector<8x1xf32>
      %197 = vector.broadcast %188 : vector<8x1xf32> to vector<8x32xf32>
      %198 = arith.subf %176, %197 : vector<8x32xf32>
      %199 = vector.broadcast %183 : vector<1x32xf32> to vector<8x32xf32>
      %200 = arith.mulf %199, %198 : vector<8x32xf32>
      %cst_80 = arith.constant 9.99999997E-7 : f32
      %201 = vector.broadcast %cst_80 : f32 to vector<8x1xf32>
      %202 = arith.addf %196, %201 : vector<8x1xf32>
      %203 = vector.broadcast %202 : vector<8x1xf32> to vector<8x32xf32>
      %204 = arith.divf %200, %203 : vector<8x32xf32>
      %205 = vector.broadcast %184 : vector<1x32xf32> to vector<8x32xf32>
      %206 = arith.addf %204, %205 : vector<8x32xf32>
      %c0_81 = arith.constant 0 : index
      %c0_82 = arith.constant 0 : index
      %c0_83 = arith.constant 0 : index
      %207 = vector.load %arg14[%c0_81, %c0_82, %c0_83] : memref<1x8x32xf32, #tpu.memory_space<vmem>>, vector<1x8x32xf32>
      %208 = vector.shape_cast %207 : vector<1x8x32xf32> to vector<8x32xf32>
      %209 = vector.shape_cast %206 : vector<8x32xf32> to vector<1x8x32xf32>
      tpu.vector_store %arg14[%c0_81, %c0_82, %c0_83], %209 {strides = array<i32>} : memref<1x8x32xf32, #tpu.memory_space<vmem>>, vector<1x8x32xf32>,
    } else {
    }
    return
  }
  func.func @transform_0(%arg0: i32, %arg1: i32) -> (i32, i32, i32) {
    %c0_i32 = arith.constant 0 : i32
    %c0_i32_0 = arith.constant 0 : i32
    %c0_i32_1 = arith.constant 0 : i32
    return %arg0, %c0_i32, %c0_i32_0 : i32, i32, i32
  }
  func.func @transform_1(%arg0: i32, %arg1: i32) -> (i32, i32, i32) {
    %c0_i32 = arith.constant 0 : i32
    %c0_i32_0 = arith.constant 0 : i32
    %c0_i32_1 = arith.constant 0 : i32
    return %arg0, %c0_i32, %c0_i32_0 : i32, i32, i32
  }
  func.func @transform_2(%arg0: i32, %arg1: i32) -> (i32, i32, i32) {
    %c0_i32 = arith.constant 0 : i32
    %c0_i32_0 = arith.constant 0 : i32
    %c0_i32_1 = arith.constant 0 : i32
    return %arg1, %c0_i32, %c0_i32_0 : i32, i32, i32
  }
  func.func @transform_3(%arg0: i32, %arg1: i32) -> (i32, i32, i32) {
    %c0_i32 = arith.constant 0 : i32
    %c0_i32_0 = arith.constant 0 : i32
    %c0_i32_1 = arith.constant 0 : i32
    return %arg1, %c0_i32, %c0_i32_0 : i32, i32, i32
  }
  func.func @transform_4(%arg0: i32, %arg1: i32) -> (i32, i32, i32) {
    %c0_i32 = arith.constant 0 : i32
    %c0_i32_0 = arith.constant 0 : i32
    %c0_i32_1 = arith.constant 0 : i32
    return %arg1, %c0_i32, %c0_i32_0 : i32, i32, i32
  }
  func.func @transform_5(%arg0: i32, %arg1: i32) -> (i32, i32, i32) {
    %c0_i32 = arith.constant 0 : i32
    %c0_i32_0 = arith.constant 0 : i32
    %c0_i32_1 = arith.constant 0 : i32
    return %arg1, %c0_i32, %c0_i32_0 : i32, i32, i32
  }
  func.func @transform_6(%arg0: i32, %arg1: i32) -> (i32, i32, i32) {
    %c0_i32 = arith.constant 0 : i32
    %c0_i32_0 = arith.constant 0 : i32
    %c0_i32_1 = arith.constant 0 : i32
    return %arg1, %c0_i32, %c0_i32_0 : i32, i32, i32
  }
  func.func @transform_7(%arg0: i32, %arg1: i32) -> (i32, i32, i32) {
    %c0_i32 = arith.constant 0 : i32
    %c0_i32_0 = arith.constant 0 : i32
    %c0_i32_1 = arith.constant 0 : i32
    return %arg1, %c0_i32, %c0_i32_0 : i32, i32, i32
  }
  func.func @transform_8(%arg0: i32, %arg1: i32) -> (i32, i32, i32) {
    %c0_i32 = arith.constant 0 : i32
    %c0_i32_0 = arith.constant 0 : i32
    %c0_i32_1 = arith.constant 0 : i32
    return %arg1, %c0_i32, %c0_i32_0 : i32, i32, i32
  }
  func.func @transform_9(%arg0: i32, %arg1: i32) -> (i32, i32, i32) {
    %c0_i32 = arith.constant 0 : i32
    %c0_i32_0 = arith.constant 0 : i32
    %c0_i32_1 = arith.constant 0 : i32
    return %arg1, %c0_i32, %c0_i32_0 : i32, i32, i32
  }
  func.func @transform_10(%arg0: i32, %arg1: i32) -> (i32, i32, i32) {
    %c0_i32 = arith.constant 0 : i32
    %c0_i32_0 = arith.constant 0 : i32
    %c0_i32_1 = arith.constant 0 : i32
    return %arg1, %c0_i32, %c0_i32_0 : i32, i32, i32
  }
  func.func @transform_11(%arg0: i32, %arg1: i32) -> (i32, i32) {
    %c0_i32 = arith.constant 0 : i32
    %c0_i32_0 = arith.constant 0 : i32
    %c0_i32_1 = arith.constant 0 : i32
    return %c0_i32, %c0_i32_0 : i32, i32
  }
  func.func @transform_12(%arg0: i32, %arg1: i32) -> (i32, i32, i32) {
    %c0_i32 = arith.constant 0 : i32
    %c0_i32_0 = arith.constant 0 : i32
    %c0_i32_1 = arith.constant 0 : i32
    return %arg0, %c0_i32, %c0_i32_0 : i32, i32, i32
  }
}

</mosaic_0001>

<llo_original>
// kernel: tpu_custom_call.1
$region0: #{tpu_custom_call.1}
  #allocation0 [shape = 'u32[]', space=smem, size = 0x4, offset = 0x4, fixed_abs, tag = 'smem constant byte address 0x4 - core index']
  #allocation1 [shape = 'u32[144,128]{1,0:T(1,128)}', space=vmem, size = 0x12000, scoped, tag = 'internal scratch']
  %s0 = inlined_call_operand.hbm [shape: f32[2,8,32], index: 0, kind: input, shape index: {}]
  %s1 = inlined_call_operand.vmem [shape: f32[2,1,8], index: 1, kind: input, shape index: {}]
  %s2 = inlined_call_operand.vmem [shape: f32[2,32,96], index: 2, kind: input, shape index: {}]
  %s3 = inlined_call_operand.hbm [shape: f32[2,1,96], index: 3, kind: input, shape index: {}]
  %s4 = inlined_call_operand.vmem [shape: f32[2,32,32], index: 4, kind: input, shape index: {}]
  %s5 = inlined_call_operand.vmem [shape: f32[2,1,32], index: 5, kind: input, shape index: {}]
  %s6 = inlined_call_operand.vmem [shape: f32[2,32,64], index: 6, kind: input, shape index: {}]
  %s7 = inlined_call_operand.vmem [shape: f32[2,1,64], index: 7, kind: input, shape index: {}]
  %s8 = inlined_call_operand.vmem [shape: f32[2,64,32], index: 8, kind: input, shape index: {}]
  %s9 = inlined_call_operand.vmem [shape: f32[2,1,32], index: 9, kind: input, shape index: {}]
  %s10 = inlined_call_operand.vmem [shape: f32[2,4,32], index: 10, kind: input, shape index: {}]
  %s11 = inlined_call_operand.vmem [shape: f32[2,32], index: 11, kind: input, shape index: {}]
  %s12 = inlined_call_operand.hbm [shape: f32[2,8,32], index: 12, kind: output, shape index: {}]
  %s13 = sld [smem:[#allocation0]]
  $region97: #{tpu_custom_call.1} parent=0
    _
  %s15 = ssub.s32 1, %s13
  %s16 = scalar_select 0, %s15, %s13
  $region1: #{tpu_custom_call.1} parent=0
    #allocation2 [shape = 'u8[8192]{0}', space=vmem, size = 0x2000, scoped, tag = 'input window, operand 0']
    #allocation3 [shape = 's32[2]{0}', space=sflag, size = 0x8, scoped, tag = 'scoped memory for tpu_custom_call.1']
    #allocation4 [shape = 's32[2]{0}', space=sflag, size = 0x8, scoped, tag = 'scoped memory for tpu_custom_call.1']
    #allocation5 [shape = 'u8[1024]{0}', space=vmem, size = 0x400, scoped, tag = 'input window, operand 3']
    #allocation6 [shape = 's32[2]{0}', space=sflag, size = 0x8, scoped, tag = 'scoped memory for tpu_custom_call.1']
    #allocation7 [shape = 'u8[8192]{0}', space=vmem, size = 0x2000, scoped, tag = 'output window, operand 0']
    %17 = vsyncpa [#allocation3], 0
    %s18 = scalar_lea.sflag [#allocation3], 1
    %19 = vsyncpa %s18, 0
    %20 = vsyncpa [#allocation6], 0
    %s21 = scalar_lea.sflag [#allocation6], 1
    %22 = vsyncpa %s21, 0
    %23 = vsyncpa [#allocation4], 0
    %s24 = scalar_lea.sflag [#allocation4], 1
    %25 = vsyncpa %s24, 0
    loop: start=0, step=1, limit=6
    $region2: #{tpu_custom_call.1} parent=1 // loop_pre_header
      _
    $region3: #{tpu_custom_call.1} parent=1 // loop_header
      %s27 = sphi 0, %s31
      %p28 = scmp.ge.s32.totalorder %s27, 6
      %s34 = sphi 0, %s46
      %s35 = sphi 0, %s42
      %s36 = sphi 0, %s34
      %s37 = sphi 0, %s35
      %s38 = sphi 0, %s36
      %s39 = sphi 0, %s37
      %s49 = sphi 0, %s51
      %s52 = sphi 0, %s49
      %s53 = sphi 0, %s52
      %s69 = sphi 0, %s53
      %s75 = sphi 0, %s77
      %s78 = sphi 0, %s75
      %s79 = sphi 0, %s78
      %s95 = sphi 0, %s79
      %s101 = sphi 0, %s103
      %s104 = sphi 0, %s101
      %s105 = sphi 0, %s104
      %s121 = sphi 0, %s105
      %s127 = sphi 0, %s129
      %s130 = sphi 0, %s127
      %s131 = sphi 0, %s130
      %s147 = sphi 0, %s131
      %s153 = sphi 0, %s155
      %s156 = sphi 0, %s153
      %s157 = sphi 0, %s156
      %s173 = sphi 0, %s157
      %s179 = sphi 0, %s181
      %s182 = sphi 0, %s179
      %s183 = sphi 0, %s182
      %s199 = sphi 0, %s183
      %s205 = sphi 0, %s207
      %s208 = sphi 0, %s205
      %s209 = sphi 0, %s208
      %s225 = sphi 0, %s209
      %s231 = sphi 0, %s233
      %s234 = sphi 0, %s231
      %s235 = sphi 0, %s234
      %s251 = sphi 0, %s235
      %s257 = sphi 0, %s259
      %s260 = sphi 0, %s257
      %s261 = sphi 0, %s260
      %s277 = sphi 0, %s261
      %s283 = sphi 0, %s285
      %s286 = sphi 0, %s283
      %s287 = sphi 0, %s286
      %s303 = sphi 0, %s287
      %s309 = sphi 0, %s311
      %s312 = sphi 0, %s309
      %s313 = sphi 0, %s312
      %s329 = sphi 0, %s313
      %s333 = sphi 0, %s333
      %s335 = sphi 0, %s333
      %s336 = sphi 0, %s335
      %s350 = sphi 0, %s336
      %s356 = sphi 0, %s358
      %s359 = sphi 0, %s356
      %s360 = sphi 0, %s359
      %s376 = sphi 0, %s360
    $region4: #{tpu_custom_call.1} parent=1 // loop_header_branch
      %30 = sbr.rel (%p28) target = $region8
    $region5: #{tpu_custom_call.1} parent=1 // loop_body
      %s32 = ssub.s32 %s27, 1
      %s33 = ssub.s32 %s27, 2
      %s40 = sadd.s32 1, %s35
      %p41 = scmp.ge.s32.totalorder %s40, 2
      %s42 = scalar_select %p41, 0, %s40
      %s43 = sadd.s32 1, %s34
      %s44 = scalar_select %p41, %s43, %s34
      %p45 = scmp.ge.s32.totalorder %s44, 2
      %s46 = scalar_select %p45, 0, %s44
      %s47 = ssub.s32 %s34, %s46
      %p48 = scmp.eq.s32.totalorder %s47, 0
      %s50 = sadd.s32 %s49, 1
      %s51 = scalar_select %p48, %s49, %s50
      %p54 = pneg %p48
      %p55 = scmp.eq.s32.totalorder %s27, 3
      %p56 = por %p54, %p55
      %p57 = scmp.ne.s32.totalorder %s49, %s52
      %p58 = scmp.eq.s32.totalorder %s27, 0
      %p59 = por %p57, %p58
      %p60 = scmp.ne.s32.totalorder %s49, %s52
      %p61 = scmp.eq.s32.totalorder %s32, 3
      %p62 = por %p60, %p61
      %p63 = scmp.ne.s32.totalorder %s52, %s53
      %p64 = scmp.eq.s32.totalorder %s32, 0
      %p65 = por %p63, %p64
      %p66 = scmp.ne.s32.totalorder %s52, %s53
      %p67 = scmp.eq.s32.totalorder %s33, 3
      %p68 = por %p66, %p67
      %p70 = scmp.ne.s32.totalorder %s53, %s69
      %p71 = scmp.eq.s32.totalorder %s33, 0
      %p72 = por %p70, %p71
      %s73 = ssub.s32 %s34, %s46
      %p74 = scmp.eq.s32.totalorder %s73, 0
      %s76 = sadd.s32 %s75, 1
      %s77 = scalar_select %p74, %s75, %s76
      %p80 = pneg %p74
      %p81 = scmp.eq.s32.totalorder %s27, 3
      %p82 = por %p80, %p81
      %p83 = scmp.ne.s32.totalorder %s75, %s78
      %p84 = scmp.eq.s32.totalorder %s27, 0
      %p85 = por %p83, %p84
      %p86 = scmp.ne.s32.totalorder %s75, %s78
      %p87 = scmp.eq.s32.totalorder %s32, 3
      %p88 = por %p86, %p87
      %p89 = scmp.ne.s32.totalorder %s78, %s79
      %p90 = scmp.eq.s32.totalorder %s32, 0
      %p91 = por %p89, %p90
      %p92 = scmp.ne.s32.totalorder %s78, %s79
      %p93 = scmp.eq.s32.totalorder %s33, 3
      %p94 = por %p92, %p93
      %p96 = scmp.ne.s32.totalorder %s79, %s95
      %p97 = scmp.eq.s32.totalorder %s33, 0
      %p98 = por %p96, %p97
      %s99 = ssub.s32 %s35, %s42
      %p100 = scmp.eq.s32.totalorder %s99, 0
      %s102 = sadd.s32 %s101, 1
      %s103 = scalar_select %p100, %s101, %s102
      %p106 = pneg %p100
      %p107 = scmp.eq.s32.totalorder %s27, 3
      %p108 = por %p106, %p107
      %p109 = scmp.ne.s32.totalorder %s101, %s104
      %p110 = scmp.eq.s32.totalorder %s27, 0
      %p111 = por %p109, %p110
      %p112 = scmp.ne.s32.totalorder %s101, %s104
      %p113 = scmp.eq.s32.totalorder %s32, 3
      %p114 = por %p112, %p113
      %p115 = scmp.ne.s32.totalorder %s104, %s105
      %p116 = scmp.eq.s32.totalorder %s32, 0
      %p117 = por %p115, %p116
      %p118 = scmp.ne.s32.totalorder %s104, %s105
      %p119 = scmp.eq.s32.totalorder %s33, 3
      %p120 = por %p118, %p119
      %p122 = scmp.ne.s32.totalorder %s105, %s121
      %p123 = scmp.eq.s32.totalorder %s33, 0
      %p124 = por %p122, %p123
      %s125 = ssub.s32 %s35, %s42
      %p126 = scmp.eq.s32.totalorder %s125, 0
      %s128 = sadd.s32 %s127, 1
      %s129 = scalar_select %p126, %s127, %s128
      %p132 = pneg %p126
      %p133 = scmp.eq.s32.totalorder %s27, 3
      %p134 = por %p132, %p133
      %p135 = scmp.ne.s32.totalorder %s127, %s130
      %p136 = scmp.eq.s32.totalorder %s27, 0
      %p137 = por %p135, %p136
      %p138 = scmp.ne.s32.totalorder %s127, %s130
      %p139 = scmp.eq.s32.totalorder %s32, 3
      %p140 = por %p138, %p139
      %p141 = scmp.ne.s32.totalorder %s130, %s131
      %p142 = scmp.eq.s32.totalorder %s32, 0
      %p143 = por %p141, %p142
      %p144 = scmp.ne.s32.totalorder %s130, %s131
      %p145 = scmp.eq.s32.totalorder %s33, 3
      %p146 = por %p144, %p145
      %p148 = scmp.ne.s32.totalorder %s131, %s147
      %p149 = scmp.eq.s32.totalorder %s33, 0
      %p150 = por %p148, %p149
      %s151 = ssub.s32 %s35, %s42
      %p152 = scmp.eq.s32.totalorder %s151, 0
      %s154 = sadd.s32 %s153, 1
      %s155 = scalar_select %p152, %s153, %s154
      %p158 = pneg %p152
      %p159 = scmp.eq.s32.totalorder %s27, 3
      %p160 = por %p158, %p159
      %p161 = scmp.ne.s32.totalorder %s153, %s156
      %p162 = scmp.eq.s32.totalorder %s27, 0
      %p163 = por %p161, %p162
      %p164 = scmp.ne.s32.totalorder %s153, %s156
      %p165 = scmp.eq.s32.totalorder %s32, 3
      %p166 = por %p164, %p165
      %p167 = scmp.ne.s32.totalorder %s156, %s157
      %p168 = scmp.eq.s32.totalorder %s32, 0
      %p169 = por %p167, %p168
      %p170 = scmp.ne.s32.totalorder %s156, %s157
      %p171 = scmp.eq.s32.totalorder %s33, 3
      %p172 = por %p170, %p171
      %p174 = scmp.ne.s32.totalorder %s157, %s173
      %p175 = scmp.eq.s32.totalorder %s33, 0
      %p176 = por %p174, %p175
      %s177 = ssub.s32 %s35, %s42
      %p178 = scmp.eq.s32.totalorder %s177, 0
      %s180 = sadd.s32 %s179, 1
      %s181 = scalar_select %p178, %s179, %s180
      %p184 = pneg %p178
      %p185 = scmp.eq.s32.totalorder %s27, 3
      %p186 = por %p184, %p185
      %p187 = scmp.ne.s32.totalorder %s179, %s182
      %p188 = scmp.eq.s32.totalorder %s27, 0
      %p189 = por %p187, %p188
      %p190 = scmp.ne.s32.totalorder %s179, %s182
      %p191 = scmp.eq.s32.totalorder %s32, 3
      %p192 = por %p190, %p191
      %p193 = scmp.ne.s32.totalorder %s182, %s183
      %p194 = scmp.eq.s32.totalorder %s32, 0
      %p195 = por %p193, %p194
      %p196 = scmp.ne.s32.totalorder %s182, %s183
      %p197 = scmp.eq.s32.totalorder %s33, 3
      %p198 = por %p196, %p197
      %p200 = scmp.ne.s32.totalorder %s183, %s199
      %p201 = scmp.eq.s32.totalorder %s33, 0
      %p202 = por %p200, %p201
      %s203 = ssub.s32 %s35, %s42
      %p204 = scmp.eq.s32.totalorder %s203, 0
      %s206 = sadd.s32 %s205, 1
      %s207 = scalar_select %p204, %s205, %s206
      %p210 = pneg %p204
      %p211 = scmp.eq.s32.totalorder %s27, 3
      %p212 = por %p210, %p211
      %p213 = scmp.ne.s32.totalorder %s205, %s208
      %p214 = scmp.eq.s32.totalorder %s27, 0
      %p215 = por %p213, %p214
      %p216 = scmp.ne.s32.totalorder %s205, %s208
      %p217 = scmp.eq.s32.totalorder %s32, 3
      %p218 = por %p216, %p217
      %p219 = scmp.ne.s32.totalorder %s208, %s209
      %p220 = scmp.eq.s32.totalorder %s32, 0
      %p221 = por %p219, %p220
      %p222 = scmp.ne.s32.totalorder %s208, %s209
      %p223 = scmp.eq.s32.totalorder %s33, 3
      %p224 = por %p222, %p223
      %p226 = scmp.ne.s32.totalorder %s209, %s225
      %p227 = scmp.eq.s32.totalorder %s33, 0
      %p228 = por %p226, %p227
      %s229 = ssub.s32 %s35, %s42
      %p230 = scmp.eq.s32.totalorder %s229, 0
      %s232 = sadd.s32 %s231, 1
      %s233 = scalar_select %p230, %s231, %s232
      %p236 = pneg %p230
      %p237 = scmp.eq.s32.totalorder %s27, 3
      %p238 = por %p236, %p237
      %p239 = scmp.ne.s32.totalorder %s231, %s234
      %p240 = scmp.eq.s32.totalorder %s27, 0
      %p241 = por %p239, %p240
      %p242 = scmp.ne.s32.totalorder %s231, %s234
      %p243 = scmp.eq.s32.totalorder %s32, 3
      %p244 = por %p242, %p243
      %p245 = scmp.ne.s32.totalorder %s234, %s235
      %p246 = scmp.eq.s32.totalorder %s32, 0
      %p247 = por %p245, %p246
      %p248 = scmp.ne.s32.totalorder %s234, %s235
      %p249 = scmp.eq.s32.totalorder %s33, 3
      %p250 = por %p248, %p249
      %p252 = scmp.ne.s32.totalorder %s235, %s251
      %p253 = scmp.eq.s32.totalorder %s33, 0
      %p254 = por %p252, %p253
      %s255 = ssub.s32 %s35, %s42
      %p256 = scmp.eq.s32.totalorder %s255, 0
      %s258 = sadd.s32 %s257, 1
      %s259 = scalar_select %p256, %s257, %s258
      %p262 = pneg %p256
      %p263 = scmp.eq.s32.totalorder %s27, 3
      %p264 = por %p262, %p263
      %p265 = scmp.ne.s32.totalorder %s257, %s260
      %p266 = scmp.eq.s32.totalorder %s27, 0
      %p267 = por %p265, %p266
      %p268 = scmp.ne.s32.totalorder %s257, %s260
      %p269 = scmp.eq.s32.totalorder %s32, 3
      %p270 = por %p268, %p269
      %p271 = scmp.ne.s32.totalorder %s260, %s261
      %p272 = scmp.eq.s32.totalorder %s32, 0
      %p273 = por %p271, %p272
      %p274 = scmp.ne.s32.totalorder %s260, %s261
      %p275 = scmp.eq.s32.totalorder %s33, 3
      %p276 = por %p274, %p275
      %p278 = scmp.ne.s32.totalorder %s261, %s277
      %p279 = scmp.eq.s32.totalorder %s33, 0
      %p280 = por %p278, %p279
      %s281 = ssub.s32 %s35, %s42
      %p282 = scmp.eq.s32.totalorder %s281, 0
      %s284 = sadd.s32 %s283, 1
      %s285 = scalar_select %p282, %s283, %s284
      %p288 = pneg %p282
      %p289 = scmp.eq.s32.totalorder %s27, 3
      %p290 = por %p288, %p289
      %p291 = scmp.ne.s32.totalorder %s283, %s286
      %p292 = scmp.eq.s32.totalorder %s27, 0
      %p293 = por %p291, %p292
      %p294 = scmp.ne.s32.totalorder %s283, %s286
      %p295 = scmp.eq.s32.totalorder %s32, 3
      %p296 = por %p294, %p295
      %p297 = scmp.ne.s32.totalorder %s286, %s287
      %p298 = scmp.eq.s32.totalorder %s32, 0
      %p299 = por %p297, %p298
      %p300 = scmp.ne.s32.totalorder %s286, %s287
      %p301 = scmp.eq.s32.totalorder %s33, 3
      %p302 = por %p300, %p301
      %p304 = scmp.ne.s32.totalorder %s287, %s303
      %p305 = scmp.eq.s32.totalorder %s33, 0
      %p306 = por %p304, %p305
      %s307 = ssub.s32 %s35, %s42
      %p308 = scmp.eq.s32.totalorder %s307, 0
      %s310 = sadd.s32 %s309, 1
      %s311 = scalar_select %p308, %s309, %s310
      %p314 = pneg %p308
      %p315 = scmp.eq.s32.totalorder %s27, 3
      %p316 = por %p314, %p315
      %p317 = scmp.ne.s32.totalorder %s309, %s312
      %p318 = scmp.eq.s32.totalorder %s27, 0
      %p319 = por %p317, %p318
      %p320 = scmp.ne.s32.totalorder %s309, %s312
      %p321 = scmp.eq.s32.totalorder %s32, 3
      %p322 = por %p320, %p321
      %p323 = scmp.ne.s32.totalorder %s312, %s313
      %p324 = scmp.eq.s32.totalorder %s32, 0
      %p325 = por %p323, %p324
      %p326 = scmp.ne.s32.totalorder %s312, %s313
      %p327 = scmp.eq.s32.totalorder %s33, 3
      %p328 = por %p326, %p327
      %p330 = scmp.ne.s32.totalorder %s313, %s329
      %p331 = scmp.eq.s32.totalorder %s33, 0
      %p332 = por %p330, %p331
      %s334 = sadd.s32 %s333, 1
      %p337 = scmp.eq.s32.totalorder %s27, 3
      %p338 = scmp.ne.s32.totalorder %s333, %s335
      %p339 = scmp.eq.s32.totalorder %s27, 0
      %p340 = por %p338, %p339
      %p341 = scmp.ne.s32.totalorder %s333, %s335
      %p342 = scmp.eq.s32.totalorder %s32, 3
      %p343 = por %p341, %p342
      %p344 = scmp.ne.s32.totalorder %s335, %s336
      %p345 = scmp.eq.s32.totalorder %s32, 0
      %p346 = por %p344, %p345
      %p347 = scmp.ne.s32.totalorder %s335, %s336
      %p348 = scmp.eq.s32.totalorder %s33, 3
      %p349 = por %p347, %p348
      %p351 = scmp.ne.s32.totalorder %s336, %s350
      %p352 = scmp.eq.s32.totalorder %s33, 0
      %p353 = por %p351, %p352
      %s354 = ssub.s32 %s34, %s46
      %p355 = scmp.eq.s32.totalorder %s354, 0
      %s357 = sadd.s32 %s356, 1
      %s358 = scalar_select %p355, %s356, %s357
      %p361 = pneg %p355
      %p362 = scmp.eq.s32.totalorder %s27, 3
      %p363 = por %p361, %p362
      %p364 = scmp.ne.s32.totalorder %s356, %s359
      %p365 = scmp.eq.s32.totalorder %s27, 0
      %p366 = por %p364, %p365
      %p367 = scmp.ne.s32.totalorder %s356, %s359
      %p368 = scmp.eq.s32.totalorder %s32, 3
      %p369 = por %p367, %p368
      %p370 = scmp.ne.s32.totalorder %s359, %s360
      %p371 = scmp.eq.s32.totalorder %s32, 0
      %p372 = por %p370, %p371
      %p373 = scmp.ne.s32.totalorder %s359, %s360
      %p374 = scmp.eq.s32.totalorder %s33, 3
      %p375 = por %p373, %p374
      %p377 = scmp.ne.s32.totalorder %s360, %s376
      %p378 = scmp.eq.s32.totalorder %s33, 0
      %p379 = por %p377, %p378
      %p380 = scmp.le.s32.totalorder 1, %s27
      %p381 = scmp.lt.s32.totalorder %s27, 5
      %p382 = pnand %p380, %p381
      %p383 = pneg %p382
      // Predicated region
      $region9: #{tpu_custom_call.1} parent=5 // pred_check
        _
      $region10: #{tpu_custom_call.1} parent=5 // pred_check_branch
        %385 = sbr.rel (%p382) target = $region12
      $region11: #{tpu_custom_call.1} parent=5 // pred_region
        %s386 = ssub.s32 %s27, 1
        // Predicated region
        $region13: #{tpu_custom_call.1} parent=11 // pred_check
          %p387 = pneg %p346
        $region14: #{tpu_custom_call.1} parent=11 // pred_check_branch
          %389 = sbr.rel (%p387) target = $region16
        $region15: #{tpu_custom_call.1} parent=11 // pred_region
          _
        $region16: #{tpu_custom_call.1} parent=11 // pred_fallthru
          _
      $region12: #{tpu_custom_call.1} parent=5 // pred_fallthru
        _
      %p390 = scmp.lt.s32.totalorder %s27, 4
      // Predicated region
      $region17: #{tpu_custom_call.1} parent=5 // pred_check
        %p391 = pneg %p390
      $region18: #{tpu_custom_call.1} parent=5 // pred_check_branch
        %393 = sbr.rel (%p391) target = $region20
      $region19: #{tpu_custom_call.1} parent=5 // pred_region
        // Predicated region
        $region21: #{tpu_custom_call.1} parent=19 // pred_check
          %p394 = pneg %p59
        $region22: #{tpu_custom_call.1} parent=19 // pred_check_branch
          %396 = sbr.rel (%p394) target = $region24
        $region23: #{tpu_custom_call.1} parent=19 // pred_region
          %s397 = sand.u32 %s49, 1
          %s398 = scalar_lea.sflag [#allocation3], %s397
          %s399 = sand.u32 %s49, 1
          %s400 = smul.addr %s399, 8
          %s401 = scalar_lea.vmem [#allocation2], %s400
          %s403 = ssub.s32 128, 128
          %404 = vsyncadd %s398, %s403
          %s405 = smul.addr %s34, 128
          %s406 = scalar_lea.hbm %s0, %s405
          %s408 = sshll.u32 %s401, 4
          %s409 = int_to_ptr.vmem [resolvable:$true] %s408
          %411 = dma.hbm_to_vmem [thread:$0]  %s406, 128, %s409, %s398
        $region24: #{tpu_custom_call.1} parent=19 // pred_fallthru
          _
        // Predicated region
        $region25: #{tpu_custom_call.1} parent=19 // pred_check
          %p412 = pneg %p85
        $region26: #{tpu_custom_call.1} parent=19 // pred_check_branch
          %414 = sbr.rel (%p412) target = $region28
        $region27: #{tpu_custom_call.1} parent=19 // pred_region
          %p415 = scmp.lt.s32.totalorder %s34, 1
          %s416 = scalar_select %p415, %s34, 1
          %s417 = scalar_lea.vmem %s1, %s416
        $region28: #{tpu_custom_call.1} parent=19 // pred_fallthru
          _
        // Predicated region
        $region29: #{tpu_custom_call.1} parent=19 // pred_check
          %p418 = pneg %p111
        $region30: #{tpu_custom_call.1} parent=19 // pred_check_branch
          %420 = sbr.rel (%p418) target = $region32
        $region31: #{tpu_custom_call.1} parent=19 // pred_region
          %p421 = scmp.lt.s32.totalorder %s35, 1
          %s422 = scalar_select %p421, %s35, 1
          %s423 = smul.addr %s422, 4
          %s424 = smul.addr %s423, 8
          %s425 = scalar_lea.vmem %s2, %s424
        $region32: #{tpu_custom_call.1} parent=19 // pred_fallthru
          _
        // Predicated region
        $region33: #{tpu_custom_call.1} parent=19 // pred_check
          %p426 = pneg %p137
        $region34: #{tpu_custom_call.1} parent=19 // pred_check_branch
          %428 = sbr.rel (%p426) target = $region36
        $region35: #{tpu_custom_call.1} parent=19 // pred_region
          %s429 = sand.u32 %s127, 1
          %s430 = scalar_lea.sflag [#allocation6], %s429
          %s431 = sand.u32 %s127, 1
          %s432 = scalar_lea.vmem [#allocation5], %s431
          %s434 = ssub.s32 16, 16
          %435 = vsyncadd %s430, %s434
          %s436 = smul.addr %s35, 16
          %s437 = scalar_lea.hbm %s3, %s436
          %s439 = sshll.u32 %s432, 4
          %s440 = int_to_ptr.vmem [resolvable:$true] %s439
          %442 = dma.hbm_to_vmem [thread:$0]  %s437, 16, %s440, %s430
        $region36: #{tpu_custom_call.1} parent=19 // pred_fallthru
          _
        // Predicated region
        $region37: #{tpu_custom_call.1} parent=19 // pred_check
          %p443 = pneg %p163
        $region38: #{tpu_custom_call.1} parent=19 // pred_check_branch
          %445 = sbr.rel (%p443) target = $region40
        $region39: #{tpu_custom_call.1} parent=19 // pred_region
          %p446 = scmp.lt.s32.totalorder %s35, 1
          %s447 = scalar_select %p446, %s35, 1
          %s448 = smul.addr %s447, 4
          %s449 = smul.addr %s448, 8
          %s450 = scalar_lea.vmem %s4, %s449
        $region40: #{tpu_custom_call.1} parent=19 // pred_fallthru
          _
        // Predicated region
        $region41: #{tpu_custom_call.1} parent=19 // pred_check
          %p451 = pneg %p189
        $region42: #{tpu_custom_call.1} parent=19 // pred_check_branch
          %453 = sbr.rel (%p451) target = $region44
        $region43: #{tpu_custom_call.1} parent=19 // pred_region
          %p454 = scmp.lt.s32.totalorder %s35, 1
          %s455 = scalar_select %p454, %s35, 1
          %s456 = scalar_lea.vmem %s5, %s455
        $region44: #{tpu_custom_call.1} parent=19 // pred_fallthru
          _
        // Predicated region
        $region45: #{tpu_custom_call.1} parent=19 // pred_check
          %p457 = pneg %p215
        $region46: #{tpu_custom_call.1} parent=19 // pred_check_branch
          %459 = sbr.rel (%p457) target = $region48
        $region47: #{tpu_custom_call.1} parent=19 // pred_region
          %p460 = scmp.lt.s32.totalorder %s35, 1
          %s461 = scalar_select %p460, %s35, 1
          %s462 = smul.addr %s461, 4
          %s463 = smul.addr %s462, 8
          %s464 = scalar_lea.vmem %s6, %s463
        $region48: #{tpu_custom_call.1} parent=19 // pred_fallthru
          _
        // Predicated region
        $region49: #{tpu_custom_call.1} parent=19 // pred_check
          %p465 = pneg %p241
        $region50: #{tpu_custom_call.1} parent=19 // pred_check_branch
          %467 = sbr.rel (%p465) target = $region52
        $region51: #{tpu_custom_call.1} parent=19 // pred_region
          %p468 = scmp.lt.s32.totalorder %s35, 1
          %s469 = scalar_select %p468, %s35, 1
          %s470 = scalar_lea.vmem %s7, %s469
        $region52: #{tpu_custom_call.1} parent=19 // pred_fallthru
          _
        // Predicated region
        $region53: #{tpu_custom_call.1} parent=19 // pred_check
          %p471 = pneg %p267
        $region54: #{tpu_custom_call.1} parent=19 // pred_check_branch
          %473 = sbr.rel (%p471) target = $region56
        $region55: #{tpu_custom_call.1} parent=19 // pred_region
          %p474 = scmp.lt.s32.totalorder %s35, 1
          %s475 = scalar_select %p474, %s35, 1
          %s476 = smul.addr %s475, 8
          %s477 = smul.addr %s476, 8
          %s478 = scalar_lea.vmem %s8, %s477
        $region56: #{tpu_custom_call.1} parent=19 // pred_fallthru
          _
        // Predicated region
        $region57: #{tpu_custom_call.1} parent=19 // pred_check
          %p479 = pneg %p293
        $region58: #{tpu_custom_call.1} parent=19 // pred_check_branch
          %481 = sbr.rel (%p479) target = $region60
        $region59: #{tpu_custom_call.1} parent=19 // pred_region
          %p482 = scmp.lt.s32.totalorder %s35, 1
          %s483 = scalar_select %p482, %s35, 1
          %s484 = scalar_lea.vmem %s9, %s483
        $region60: #{tpu_custom_call.1} parent=19 // pred_fallthru
          _
        // Predicated region
        $region61: #{tpu_custom_call.1} parent=19 // pred_check
          %p485 = pneg %p319
        $region62: #{tpu_custom_call.1} parent=19 // pred_check_branch
          %487 = sbr.rel (%p485) target = $region64
        $region63: #{tpu_custom_call.1} parent=19 // pred_region
          %p488 = scmp.lt.s32.totalorder %s35, 1
          %s489 = scalar_select %p488, %s35, 1
          %s490 = smul.addr %s489, 4
          %s491 = scalar_lea.vmem %s10, %s490
        $region64: #{tpu_custom_call.1} parent=19 // pred_fallthru
          _
      $region20: #{tpu_custom_call.1} parent=5 // pred_fallthru
        _
      %p492 = scmp.le.s32.totalorder 1, %s27
      %p493 = scmp.lt.s32.totalorder %s27, 5
      %p494 = pnand %p492, %p493
      %p495 = pneg %p494
      // Predicated region
      $region65: #{tpu_custom_call.1} parent=5 // pred_check
        _
      $region66: #{tpu_custom_call.1} parent=5 // pred_check_branch
        %497 = sbr.rel (%p494) target = $region68
      $region67: #{tpu_custom_call.1} parent=5 // pred_region
        %s498 = ssub.s32 %s27, 1
        %s499 = sand.u32 %s52, 1
        %s500 = scalar_lea.sflag [#allocation3], %s499
        %s501 = sand.u32 %s52, 1
        %s502 = smul.addr %s501, 8
        %s503 = scalar_lea.vmem [#allocation2], %s502
        // Predicated region
        $region69: #{tpu_custom_call.1} parent=67 // pred_check
          %p504 = pneg %p65
        $region70: #{tpu_custom_call.1} parent=67 // pred_check_branch
          %506 = sbr.rel (%p504) target = $region72
        $region71: #{tpu_custom_call.1} parent=67 // pred_region
          %507 = dma.done %s500, 128
        $region72: #{tpu_custom_call.1} parent=67 // pred_fallthru
          _
        %s508 = sand.u32 %s130, 1
        %s509 = scalar_lea.sflag [#allocation6], %s508
        %s510 = sand.u32 %s130, 1
        %s511 = scalar_lea.vmem [#allocation5], %s510
        // Predicated region
        $region73: #{tpu_custom_call.1} parent=67 // pred_check
          %p512 = pneg %p143
        $region74: #{tpu_custom_call.1} parent=67 // pred_check_branch
          %514 = sbr.rel (%p512) target = $region76
        $region75: #{tpu_custom_call.1} parent=67 // pred_region
          %515 = dma.done %s509, 16
        $region76: #{tpu_custom_call.1} parent=67 // pred_fallthru
          _
        %s516 = sand.u32 %s52, 1
        %s517 = scalar_lea.sflag [#allocation3], %s516
        %s518 = sand.u32 %s52, 1
        %s519 = smul.addr %s518, 8
        %s520 = scalar_lea.vmem [#allocation2], %s519
        %p521 = pneg %p65
        %p522 = pneg %p62
        %p523 = scmp.lt.s32.totalorder %s36, 1
        %s524 = scalar_select %p523, %s36, 1
        %s525 = scalar_lea.vmem %s1, %s524
        %p526 = pneg %p91
        %p527 = pneg %p88
        %p528 = scmp.lt.s32.totalorder %s37, 1
        %s529 = scalar_select %p528, %s37, 1
        %s530 = smul.addr %s529, 4
        %s531 = smul.addr %s530, 8
        %s532 = scalar_lea.vmem %s2, %s531
        %p533 = pneg %p117
        %p534 = pneg %p114
        %s535 = sand.u32 %s130, 1
        %s536 = scalar_lea.sflag [#allocation6], %s535
        %s537 = sand.u32 %s130, 1
        %s538 = scalar_lea.vmem [#allocation5], %s537
        %p539 = pneg %p143
        %p540 = pneg %p140
        %p541 = scmp.lt.s32.totalorder %s37, 1
        %s542 = scalar_select %p541, %s37, 1
        %s543 = smul.addr %s542, 4
        %s544 = smul.addr %s543, 8
        %s545 = scalar_lea.vmem %s4, %s544
        %p546 = pneg %p169
        %p547 = pneg %p166
        %p548 = scmp.lt.s32.totalorder %s37, 1
        %s549 = scalar_select %p548, %s37, 1
        %s550 = scalar_lea.vmem %s5, %s549
        %p551 = pneg %p195
        %p552 = pneg %p192
        %p553 = scmp.lt.s32.totalorder %s37, 1
        %s554 = scalar_select %p553, %s37, 1
        %s555 = smul.addr %s554, 4
        %s556 = smul.addr %s555, 8
        %s557 = scalar_lea.vmem %s6, %s556
        %p558 = pneg %p221
        %p559 = pneg %p218
        %p560 = scmp.lt.s32.totalorder %s37, 1
        %s561 = scalar_select %p560, %s37, 1
        %s562 = scalar_lea.vmem %s7, %s561
        %p563 = pneg %p247
        %p564 = pneg %p244
        %p565 = scmp.lt.s32.totalorder %s37, 1
        %s566 = scalar_select %p565, %s37, 1
        %s567 = smul.addr %s566, 8
        %s568 = smul.addr %s567, 8
        %s569 = scalar_lea.vmem %s8, %s568
        %p570 = pneg %p273
        %p571 = pneg %p270
        %p572 = scmp.lt.s32.totalorder %s37, 1
        %s573 = scalar_select %p572, %s37, 1
        %s574 = scalar_lea.vmem %s9, %s573
        %p575 = pneg %p299
        %p576 = pneg %p296
        %p577 = scmp.lt.s32.totalorder %s37, 1
        %s578 = scalar_select %p577, %s37, 1
        %s579 = smul.addr %s578, 4
        %s580 = scalar_lea.vmem %s10, %s579
        %p581 = pneg %p325
        %p582 = pneg %p322
        %p583 = pneg %p346
        %p584 = pneg %p343
        %p585 = pneg %p372
        %p586 = pneg %p369
        %s587 = sand.u32 %s359, 1
        %s588 = scalar_lea.sflag [#allocation4], %s587
        %s589 = sand.u32 %s359, 1
        %s590 = smul.addr %s589, 8
        %s591 = scalar_lea.vmem [#allocation7], %s590
        %p592 = scmp.lt.s32.totalorder %s36, 1
        %s593 = scalar_select %p592, %s36, 1
        %s594 = scalar_lea.vmem %s1, %s593
        %p595 = scmp.lt.s32.totalorder %s37, 1
        %s596 = scalar_select %p595, %s37, 1
        %s597 = smul.addr %s596, 4
        %s598 = smul.addr %s597, 8
        %s599 = scalar_lea.vmem %s2, %s598
        %p600 = scmp.lt.s32.totalorder %s37, 1
        %s601 = scalar_select %p600, %s37, 1
        %s602 = smul.addr %s601, 4
        %s603 = smul.addr %s602, 8
        %s604 = scalar_lea.vmem %s4, %s603
        %p605 = scmp.lt.s32.totalorder %s37, 1
        %s606 = scalar_select %p605, %s37, 1
        %s607 = scalar_lea.vmem %s5, %s606
        %p608 = scmp.lt.s32.totalorder %s37, 1
        %s609 = scalar_select %p608, %s37, 1
        %s610 = smul.addr %s609, 4
        %s611 = smul.addr %s610, 8
        %s612 = scalar_lea.vmem %s6, %s611
        %p613 = scmp.lt.s32.totalorder %s37, 1
        %s614 = scalar_select %p613, %s37, 1
        %s615 = scalar_lea.vmem %s7, %s614
        %p616 = scmp.lt.s32.totalorder %s37, 1
        %s617 = scalar_select %p616, %s37, 1
        %s618 = smul.addr %s617, 8
        %s619 = smul.addr %s618, 8
        %s620 = scalar_lea.vmem %s8, %s619
        %p621 = scmp.lt.s32.totalorder %s37, 1
        %s622 = scalar_select %p621, %s37, 1
        %s623 = scalar_lea.vmem %s9, %s622
        %p624 = scmp.lt.s32.totalorder %s37, 1
        %s625 = scalar_select %p624, %s37, 1
        %s626 = smul.addr %s625, 4
        %s627 = scalar_lea.vmem %s10, %s626
        %p628 = scmp.eq.s32.totalorder %s37, 0
        // Predicated region
        $region77: #{tpu_custom_call.1} parent=67 // pred_check
          %p629 = pneg %p628
        $region78: #{tpu_custom_call.1} parent=67 // pred_check_branch
          %631 = sbr.rel (%p629) target = $region80
        $region79: #{tpu_custom_call.1} parent=67 // pred_region
          %v632 = vld [vmem:[%s503] sm:$0xff]
          %vm633 = vcmask 261120
          %634 = vst.msk [vmem:[%s591] sm:$0xff] %vm633, %v632
        $region80: #{tpu_custom_call.1} parent=67 // pred_fallthru
          _
        %v635 = vld [vmem:[%s591] sm:$0xff]
        %v636 = vld [vmem:[%s594] sm:$0x1]
        %v637 = vsub.f32 %v636, 1.0
        %v638 = vmul.f32 %v637, 1e+09
        %v639 = vld [vmem:[%s627] sm:$0xf]
        %vm640 = vcmask 261120
        %v641 = vsel %vm640, %v635, 0.0
        %642 = vadd.xlane.f32.xlu0 %v641
        %v643 = vpop.xlane.xlu0 %642
        %v644 = vrcp.pop 32.0
        %v645 = vmul.f32 %v643, %v644
        %v646 = vsub.f32 %v635, %v645
        %v647 = vmul.f32 %v646, %v646
        %v648 = vsel %vm640, %v647, 0.0
        %649 = vadd.xlane.f32.xlu0 %v648
        %v650 = vpop.xlane.xlu0 %649
        %v651 = vrcp.pop 31.0
        %v652 = vmul.f32 %v650, %v651
        %v653 = vrsqrt.pop %v652
        %v654 = vmul.f32 %v652, %v653
        %vm655 = vcmp.eq.f32.partialorder %v652, inf
        %v656 = vsel %vm655, %v652, %v654
        %vm657 = vcmp.eq.f32.partialorder %v652, 0.0
        %v658 = vand.u32 %v652, 2147483648
        %v659 = vsel %vm657, %v658, %v656
        %v660 = vlaneseq
        %v661 = vshrl.u32 %v660, 7
        %v662 = vsub.s32 0, %v661
        %v663 = vrot.slane %v639, %v662
        %v664 = vmul.f32 %v663, %v646
        %v665 = vadd.f32 %v659, 1e-06
        %v666 = vrcp.pop %v665
        %v667 = vmul.f32 %v664, %v666
        %v668 = vlaneseq
        %v669 = vshrl.u32 %v668, 7
        %v670 = vsub.s32 1, %v669
        %v671 = vrot.slane %v639, %v670
        %v672 = vadd.f32 %v667, %v671
        %v673 = vld [vmem:[%s599] sm:$0xff]
        %v674 = vld [vmem:[%s599 + $0x8] sm:$0xff]
        %v675 = vld [vmem:[%s599 + $0x10] sm:$0xff]
        %v676 = vld [vmem:[%s599 + $0x18] sm:$0xff]
        %v677 = vld [vmem:[%s511] sm:$0x1]
        %v679 = vlaneseq
        %v680 = vshrl.u32 %v679, 7
        %v681 = vsub.s32 0, %v680
        %v682 = vrot.slane %v677, %v681
        %v685 = vsel %vm640, %v672, 0
        %687 = vmatprep.subr.mxu0 0.0
        %688 = vmatpush1.msra.mxu0 %v673
        %689 = vmatprep.subr.mxu0 0.0
        %690 = vmatpush1.msra.mxu0 %v674
        %691 = vmatprep.subr.mxu0 0.0
        %692 = vmatpush1.msra.mxu0 %v675
        %693 = vmatprep.subr.mxu0 0.0
        %694 = vmatpush1.msra.mxu0 %v676
        %695 = vmatprep.subr.mxu0 0.0
        %696 = vmatpush1.msra.mxu0 0.0
        %697 = vmatprep.subr.mxu0 0.0
        %698 = vmatpush1.msra.mxu0 0.0
        %699 = vmatprep.subr.mxu0 0.0
        %700 = vmatpush1.msra.mxu0 0.0
        %701 = vmatprep.subr.mxu0 0.0
        %702 = vmatpush1.msra.mxu0 0.0
        %703 = vmatprep.subr.mxu0 0.0
        %704 = vmatpush1.msra.mxu0 0.0
        %705 = vmatprep.subr.mxu0 0.0
        %706 = vmatpush1.msra.mxu0 0.0
        %707 = vmatprep.subr.mxu0 0.0
        %708 = vmatpush1.msra.mxu0 0.0
        %709 = vmatprep.subr.mxu0 0.0
        %710 = vmatpush1.msra.mxu0 0.0
        %711 = vmatprep.subr.mxu0 0.0
        %712 = vmatpush1.msra.mxu0 0.0
        %713 = vmatprep.subr.mxu0 0.0
        %714 = vmatpush1.msra.mxu0 0.0
        %715 = vmatprep.subr.mxu0 0.0
        %716 = vmatpush1.msra.mxu0 0.0
        %717 = vmatprep.subr.mxu0 0.0
        %718 = vmatpush1.msra.mxu0 0.0
        %719 = vmatprep.subr.mxu0 0.0
        %720 = vmatpush1.msra.mxu0 0.0
        %721 = vmatprep.subr.mxu0 0.0
        %722 = vmatpush1.msra.mxu0 0.0
        %723 = vmatprep.subr.mxu0 0.0
        %724 = vmatpush1.msra.mxu0 0.0
        %725 = vmatprep.subr.mxu0 0.0
        %726 = vmatpush1.msra.mxu0 0.0
        %727 = vmatprep.subr.mxu0 0.0
        %728 = vmatpush1.msra.mxu0 0.0
        %729 = vmatprep.subr.mxu0 0.0
        %730 = vmatpush1.msra.mxu0 0.0
        %731 = vmatprep.subr.mxu0 0.0
        %732 = vmatpush1.msra.mxu0 0.0
        %733 = vmatprep.subr.mxu0 0.0
        %734 = vmatpush1.msra.mxu0 0.0
        %735 = vmatprep.subr.mxu0 0.0
        %736 = vmatpush1.msra.mxu0 0.0
        %737 = vmatprep.subr.mxu0 0.0
        %738 = vmatpush1.msra.mxu0 0.0
        %739 = vmatprep.subr.mxu0 0.0
        %740 = vmatpush1.msra.mxu0 0.0
        %741 = vmatprep.subr.mxu0 0.0
        %742 = vmatpush1.msra.mxu0 0.0
        %743 = vmatprep.subr.mxu0 0.0
        %744 = vmatpush1.msra.mxu0 0.0
        %745 = vmatprep.subr.mxu0 0.0
        %746 = vmatpush1.msra.mxu0 0.0
        %747 = vmatprep.subr.mxu0 0.0
        %748 = vmatpush1.msra.mxu0 0.0
        %749 = vmatprep.subr.mxu0 0.0
        %750 = vmatpush1.msra.mxu0 0.0
        %751 = vmatprep.mubr.f32.mxu0 0.0
        %752 = vmatmul.mubr.f32.gmra.mrb[0].mxu0 %v685
        %v753 = vpop.f32.mrb[0].mxu0
        %v754 = vadd.f32 %v682, %v753
        %v755 = vpop.f32.mrb[0].mxu0
        %756 = vdwg.mxu0
        %758 = vrot.lane.b32.xlu0 %v754, 96
        %v759 = vpop.permute.xlu0 %758
        %vm760 = vcmask 64512
        %v761 = vsel %vm760, %v754, 0
        %v763 = vsel %vm760, %v759, 0
        %765 = vmatprep.subr.mxu0 0.0
        %766 = vmatpush1.xpose.msra.mxu0 %v763
        %767 = vmatprep.subr.mxu0 0.0
        %768 = vmatpush1.xpose.msra.mxu0 0.0
        %769 = vmatprep.subr.mxu0 0.0
        %770 = vmatpush1.xpose.msra.mxu0 0.0
        %771 = vmatprep.subr.mxu0 0.0
        %772 = vmatpush1.xpose.msra.mxu0 0.0
        %773 = vmatprep.subr.mxu0 0.0
        %774 = vmatpush1.xpose.msra.mxu0 0.0
        %775 = vmatprep.subr.mxu0 0.0
        %776 = vmatpush1.xpose.msra.mxu0 0.0
        %777 = vmatprep.subr.mxu0 0.0
        %778 = vmatpush1.xpose.msra.mxu0 0.0
        %779 = vmatprep.subr.mxu0 0.0
        %780 = vmatpush1.xpose.msra.mxu0 0.0
        %781 = vmatprep.subr.mxu0 0.0
        %782 = vmatpush1.xpose.msra.mxu0 0.0
        %783 = vmatprep.subr.mxu0 0.0
        %784 = vmatpush1.xpose.msra.mxu0 0.0
        %785 = vmatprep.subr.mxu0 0.0
        %786 = vmatpush1.xpose.msra.mxu0 0.0
        %787 = vmatprep.subr.mxu0 0.0
        %788 = vmatpush1.xpose.msra.mxu0 0.0
        %789 = vmatprep.subr.mxu0 0.0
        %790 = vmatpush1.xpose.msra.mxu0 0.0
        %791 = vmatprep.subr.mxu0 0.0
        %792 = vmatpush1.xpose.msra.mxu0 0.0
        %793 = vmatprep.subr.mxu0 0.0
        %794 = vmatpush1.xpose.msra.mxu0 0.0
        %795 = vmatprep.subr.mxu0 0.0
        %796 = vmatpush1.xpose.msra.mxu0 0.0
        %797 = vmatprep.subr.mxu0 0.0
        %798 = vmatpush1.xpose.msra.mxu0 0.0
        %799 = vmatprep.subr.mxu0 0.0
        %800 = vmatpush1.xpose.msra.mxu0 0.0
        %801 = vmatprep.subr.mxu0 0.0
        %802 = vmatpush1.xpose.msra.mxu0 0.0
        %803 = vmatprep.subr.mxu0 0.0
        %804 = vmatpush1.xpose.msra.mxu0 0.0
        %805 = vmatprep.subr.mxu0 0.0
        %806 = vmatpush1.xpose.msra.mxu0 0.0
        %807 = vmatprep.subr.mxu0 0.0
        %808 = vmatpush1.xpose.msra.mxu0 0.0
        %809 = vmatprep.subr.mxu0 0.0
        %810 = vmatpush1.xpose.msra.mxu0 0.0
        %811 = vmatprep.subr.mxu0 0.0
        %812 = vmatpush1.xpose.msra.mxu0 0.0
        %813 = vmatprep.subr.mxu0 0.0
        %814 = vmatpush1.xpose.msra.mxu0 0.0
        %815 = vmatprep.subr.mxu0 0.0
        %816 = vmatpush1.xpose.msra.mxu0 0.0
        %817 = vmatprep.subr.mxu0 0.0
        %818 = vmatpush1.xpose.msra.mxu0 0.0
        %819 = vmatprep.subr.mxu0 0.0
        %820 = vmatpush1.xpose.msra.mxu0 0.0
        %821 = vmatprep.subr.mxu0 0.0
        %822 = vmatpush1.xpose.msra.mxu0 0.0
        %823 = vmatprep.subr.mxu0 0.0
        %824 = vmatpush1.xpose.msra.mxu0 0.0
        %825 = vmatprep.subr.mxu0 0.0
        %826 = vmatpush1.xpose.msra.mxu0 0.0
        %827 = vmatprep.subr.mxu0 0.0
        %828 = vmatpush1.xpose.msra.mxu0 0.0
        %829 = vmatprep.mubr.f32.mxu0 0.0
        %830 = vmatmul.mubr.f32.gmra.mrb[0].mxu0 %v761
        %v831 = vpop.f32.mrb[0].mxu0
        %v832 = vadd.f32 0.0, %v831
        %v833 = vpop.f32.mrb[0].mxu0
        %834 = vdwg.mxu0
        %v835 = vmul.f32 %v832, 0.35355338
        %v837 = vlaneseq
        %v838 = vshrl.u32 %v837, 7
        %v839 = vsub.s32 0, %v838
        %v840 = vrot.slane %v638, %v839
        %v842 = vadd.f32 %v835, %v840
        %v843 = vsel %vm760, %v842, -inf
        %844 = vmax.xlane.f32.xlu0 %v843
        %v845 = vpop.xlane.xlu0 %844
        %v846 = vsub.f32 %v842, %v845
        %v847 = vmul.f32 %v846, 1.442695
        %v848 = vpow.pop %v847
        %v849 = vsel %vm760, %v848, 0.0
        %850 = vadd.xlane.f32.xlu0 %v849
        %v851 = vpop.xlane.xlu0 %850
        %v852 = vrcp.pop %v851
        %v853 = vmul.f32 %v848, %v852
        %854 = vrot.lane.b32.xlu0 %v754, 64
        %v855 = vpop.permute.xlu0 %854
        %v858 = vsel %vm760, %v853, 0
        %860 = vmatprep.subr.mxu0 0.0
        %861 = vmatpush1.msra.mxu0 %v855
        %862 = vmatprep.subr.mxu0 0.0
        %863 = vmatpush1.msra.mxu0 0.0
        %864 = vmatprep.subr.mxu0 0.0
        %865 = vmatpush1.msra.mxu0 0.0
        %866 = vmatprep.subr.mxu0 0.0
        %867 = vmatpush1.msra.mxu0 0.0
        %868 = vmatprep.subr.mxu0 0.0
        %869 = vmatpush1.msra.mxu0 0.0
        %870 = vmatprep.subr.mxu0 0.0
        %871 = vmatpush1.msra.mxu0 0.0
        %872 = vmatprep.subr.mxu0 0.0
        %873 = vmatpush1.msra.mxu0 0.0
        %874 = vmatprep.subr.mxu0 0.0
        %875 = vmatpush1.msra.mxu0 0.0
        %876 = vmatprep.subr.mxu0 0.0
        %877 = vmatpush1.msra.mxu0 0.0
        %878 = vmatprep.subr.mxu0 0.0
        %879 = vmatpush1.msra.mxu0 0.0
        %880 = vmatprep.subr.mxu0 0.0
        %881 = vmatpush1.msra.mxu0 0.0
        %882 = vmatprep.subr.mxu0 0.0
        %883 = vmatpush1.msra.mxu0 0.0
        %884 = vmatprep.subr.mxu0 0.0
        %885 = vmatpush1.msra.mxu0 0.0
        %886 = vmatprep.subr.mxu0 0.0
        %887 = vmatpush1.msra.mxu0 0.0
        %888 = vmatprep.subr.mxu0 0.0
        %889 = vmatpush1.msra.mxu0 0.0
        %890 = vmatprep.subr.mxu0 0.0
        %891 = vmatpush1.msra.mxu0 0.0
        %892 = vmatprep.subr.mxu0 0.0
        %893 = vmatpush1.msra.mxu0 0.0
        %894 = vmatprep.subr.mxu0 0.0
        %895 = vmatpush1.msra.mxu0 0.0
        %896 = vmatprep.subr.mxu0 0.0
        %897 = vmatpush1.msra.mxu0 0.0
        %898 = vmatprep.subr.mxu0 0.0
        %899 = vmatpush1.msra.mxu0 0.0
        %900 = vmatprep.subr.mxu0 0.0
        %901 = vmatpush1.msra.mxu0 0.0
        %902 = vmatprep.subr.mxu0 0.0
        %903 = vmatpush1.msra.mxu0 0.0
        %904 = vmatprep.subr.mxu0 0.0
        %905 = vmatpush1.msra.mxu0 0.0
        %906 = vmatprep.subr.mxu0 0.0
        %907 = vmatpush1.msra.mxu0 0.0
        %908 = vmatprep.subr.mxu0 0.0
        %909 = vmatpush1.msra.mxu0 0.0
        %910 = vmatprep.subr.mxu0 0.0
        %911 = vmatpush1.msra.mxu0 0.0
        %912 = vmatprep.subr.mxu0 0.0
        %913 = vmatpush1.msra.mxu0 0.0
        %914 = vmatprep.subr.mxu0 0.0
        %915 = vmatpush1.msra.mxu0 0.0
        %916 = vmatprep.subr.mxu0 0.0
        %917 = vmatpush1.msra.mxu0 0.0
        %918 = vmatprep.subr.mxu0 0.0
        %919 = vmatpush1.msra.mxu0 0.0
        %920 = vmatprep.subr.mxu0 0.0
        %921 = vmatpush1.msra.mxu0 0.0
        %922 = vmatprep.subr.mxu0 0.0
        %923 = vmatpush1.msra.mxu0 0.0
        %924 = vmatprep.mubr.f32.mxu0 0.0
        %925 = vmatmul.mubr.f32.gmra.mrb[0].mxu0 %v858
        %v926 = vpop.f32.mrb[0].mxu0
        %v927 = vadd.f32 0.0, %v926
        %v928 = vpop.f32.mrb[0].mxu0
        %929 = vdwg.mxu0
        %930 = vrot.lane.b32.xlu0 %v754, 120
        %v931 = vpop.permute.xlu0 %930
        %932 = vrot.lane.b32.xlu0 %v754, 88
        %v933 = vpop.permute.xlu0 %932
        %v934 = vsel %vm760, %v931, 0
        %v936 = vsel %vm760, %v933, 0
        %938 = vmatprep.subr.mxu0 0.0
        %939 = vmatpush1.xpose.msra.mxu0 %v936
        %940 = vmatprep.subr.mxu0 0.0
        %941 = vmatpush1.xpose.msra.mxu0 0.0
        %942 = vmatprep.subr.mxu0 0.0
        %943 = vmatpush1.xpose.msra.mxu0 0.0
        %944 = vmatprep.subr.mxu0 0.0
        %945 = vmatpush1.xpose.msra.mxu0 0.0
        %946 = vmatprep.subr.mxu0 0.0
        %947 = vmatpush1.xpose.msra.mxu0 0.0
        %948 = vmatprep.subr.mxu0 0.0
        %949 = vmatpush1.xpose.msra.mxu0 0.0
        %950 = vmatprep.subr.mxu0 0.0
        %951 = vmatpush1.xpose.msra.mxu0 0.0
        %952 = vmatprep.subr.mxu0 0.0
        %953 = vmatpush1.xpose.msra.mxu0 0.0
        %954 = vmatprep.subr.mxu0 0.0
        %955 = vmatpush1.xpose.msra.mxu0 0.0
        %956 = vmatprep.subr.mxu0 0.0
        %957 = vmatpush1.xpose.msra.mxu0 0.0
        %958 = vmatprep.subr.mxu0 0.0
        %959 = vmatpush1.xpose.msra.mxu0 0.0
        %960 = vmatprep.subr.mxu0 0.0
        %961 = vmatpush1.xpose.msra.mxu0 0.0
        %962 = vmatprep.subr.mxu0 0.0
        %963 = vmatpush1.xpose.msra.mxu0 0.0
        %964 = vmatprep.subr.mxu0 0.0
        %965 = vmatpush1.xpose.msra.mxu0 0.0
        %966 = vmatprep.subr.mxu0 0.0
        %967 = vmatpush1.xpose.msra.mxu0 0.0
        %968 = vmatprep.subr.mxu0 0.0
        %969 = vmatpush1.xpose.msra.mxu0 0.0
        %970 = vmatprep.subr.mxu0 0.0
        %971 = vmatpush1.xpose.msra.mxu0 0.0
        %972 = vmatprep.subr.mxu0 0.0
        %973 = vmatpush1.xpose.msra.mxu0 0.0
        %974 = vmatprep.subr.mxu0 0.0
        %975 = vmatpush1.xpose.msra.mxu0 0.0
        %976 = vmatprep.subr.mxu0 0.0
        %977 = vmatpush1.xpose.msra.mxu0 0.0
        %978 = vmatprep.subr.mxu0 0.0
        %979 = vmatpush1.xpose.msra.mxu0 0.0
        %980 = vmatprep.subr.mxu0 0.0
        %981 = vmatpush1.xpose.msra.mxu0 0.0
        %982 = vmatprep.subr.mxu0 0.0
        %983 = vmatpush1.xpose.msra.mxu0 0.0
        %984 = vmatprep.subr.mxu0 0.0
        %985 = vmatpush1.xpose.msra.mxu0 0.0
        %986 = vmatprep.subr.mxu0 0.0
        %987 = vmatpush1.xpose.msra.mxu0 0.0
        %988 = vmatprep.subr.mxu0 0.0
        %989 = vmatpush1.xpose.msra.mxu0 0.0
        %990 = vmatprep.subr.mxu0 0.0
        %991 = vmatpush1.xpose.msra.mxu0 0.0
        %992 = vmatprep.subr.mxu0 0.0
        %993 = vmatpush1.xpose.msra.mxu0 0.0
        %994 = vmatprep.subr.mxu0 0.0
        %995 = vmatpush1.xpose.msra.mxu0 0.0
        %996 = vmatprep.subr.mxu0 0.0
        %997 = vmatpush1.xpose.msra.mxu0 0.0
        %998 = vmatprep.subr.mxu0 0.0
        %999 = vmatpush1.xpose.msra.mxu0 0.0
        %1000 = vmatprep.subr.mxu0 0.0
        %1001 = vmatpush1.xpose.msra.mxu0 0.0
        %1002 = vmatprep.mubr.f32.mxu0 0.0
        %1003 = vmatmul.mubr.f32.gmra.mrb[0].mxu0 %v934
        %v1004 = vpop.f32.mrb[0].mxu0
        %v1005 = vadd.f32 0.0, %v1004
        %v1006 = vpop.f32.mrb[0].mxu0
        %1007 = vdwg.mxu0
        %v1008 = vmul.f32 %v1005, 0.35355338
        %v1009 = vadd.f32 %v1008, %v840
        %v1010 = vsel %vm760, %v1009, -inf
        %1011 = vmax.xlane.f32.xlu0 %v1010
        %v1012 = vpop.xlane.xlu0 %1011
        %v1013 = vsub.f32 %v1009, %v1012
        %v1014 = vmul.f32 %v1013, 1.442695
        %v1015 = vpow.pop %v1014
        %v1016 = vsel %vm760, %v1015, 0.0
        %1017 = vadd.xlane.f32.xlu0 %v1016
        %v1018 = vpop.xlane.xlu0 %1017
        %v1019 = vrcp.pop %v1018
        %v1020 = vmul.f32 %v1015, %v1019
        %1021 = vrot.lane.b32.xlu0 %v754, 56
        %v1022 = vpop.permute.xlu0 %1021
        %v1025 = vsel %vm760, %v1020, 0
        %1027 = vmatprep.subr.mxu0 0.0
        %1028 = vmatpush1.msra.mxu0 %v1022
        %1029 = vmatprep.subr.mxu0 0.0
        %1030 = vmatpush1.msra.mxu0 0.0
        %1031 = vmatprep.subr.mxu0 0.0
        %1032 = vmatpush1.msra.mxu0 0.0
        %1033 = vmatprep.subr.mxu0 0.0
        %1034 = vmatpush1.msra.mxu0 0.0
        %1035 = vmatprep.subr.mxu0 0.0
        %1036 = vmatpush1.msra.mxu0 0.0
        %1037 = vmatprep.subr.mxu0 0.0
        %1038 = vmatpush1.msra.mxu0 0.0
        %1039 = vmatprep.subr.mxu0 0.0
        %1040 = vmatpush1.msra.mxu0 0.0
        %1041 = vmatprep.subr.mxu0 0.0
        %1042 = vmatpush1.msra.mxu0 0.0
        %1043 = vmatprep.subr.mxu0 0.0
        %1044 = vmatpush1.msra.mxu0 0.0
        %1045 = vmatprep.subr.mxu0 0.0
        %1046 = vmatpush1.msra.mxu0 0.0
        %1047 = vmatprep.subr.mxu0 0.0
        %1048 = vmatpush1.msra.mxu0 0.0
        %1049 = vmatprep.subr.mxu0 0.0
        %1050 = vmatpush1.msra.mxu0 0.0
        %1051 = vmatprep.subr.mxu0 0.0
        %1052 = vmatpush1.msra.mxu0 0.0
        %1053 = vmatprep.subr.mxu0 0.0
        %1054 = vmatpush1.msra.mxu0 0.0
        %1055 = vmatprep.subr.mxu0 0.0
        %1056 = vmatpush1.msra.mxu0 0.0
        %1057 = vmatprep.subr.mxu0 0.0
        %1058 = vmatpush1.msra.mxu0 0.0
        %1059 = vmatprep.subr.mxu0 0.0
        %1060 = vmatpush1.msra.mxu0 0.0
        %1061 = vmatprep.subr.mxu0 0.0
        %1062 = vmatpush1.msra.mxu0 0.0
        %1063 = vmatprep.subr.mxu0 0.0
        %1064 = vmatpush1.msra.mxu0 0.0
        %1065 = vmatprep.subr.mxu0 0.0
        %1066 = vmatpush1.msra.mxu0 0.0
        %1067 = vmatprep.subr.mxu0 0.0
        %1068 = vmatpush1.msra.mxu0 0.0
        %1069 = vmatprep.subr.mxu0 0.0
        %1070 = vmatpush1.msra.mxu0 0.0
        %1071 = vmatprep.subr.mxu0 0.0
        %1072 = vmatpush1.msra.mxu0 0.0
        %1073 = vmatprep.subr.mxu0 0.0
        %1074 = vmatpush1.msra.mxu0 0.0
        %1075 = vmatprep.subr.mxu0 0.0
        %1076 = vmatpush1.msra.mxu0 0.0
        %1077 = vmatprep.subr.mxu0 0.0
        %1078 = vmatpush1.msra.mxu0 0.0
        %1079 = vmatprep.subr.mxu0 0.0
        %1080 = vmatpush1.msra.mxu0 0.0
        %1081 = vmatprep.subr.mxu0 0.0
        %1082 = vmatpush1.msra.mxu0 0.0
        %1083 = vmatprep.subr.mxu0 0.0
        %1084 = vmatpush1.msra.mxu0 0.0
        %1085 = vmatprep.subr.mxu0 0.0
        %1086 = vmatpush1.msra.mxu0 0.0
        %1087 = vmatprep.subr.mxu0 0.0
        %1088 = vmatpush1.msra.mxu0 0.0
        %1089 = vmatprep.subr.mxu0 0.0
        %1090 = vmatpush1.msra.mxu0 0.0
        %1091 = vmatprep.mubr.f32.mxu0 0.0
        %1092 = vmatmul.mubr.f32.gmra.mrb[0].mxu0 %v1025
        %v1093 = vpop.f32.mrb[0].mxu0
        %v1094 = vadd.f32 0.0, %v1093
        %v1095 = vpop.f32.mrb[0].mxu0
        %1096 = vdwg.mxu0
        %1097 = vrot.lane.b32.xlu0 %v754, 112
        %v1098 = vpop.permute.xlu0 %1097
        %1099 = vrot.lane.b32.xlu0 %v754, 80
        %v1100 = vpop.permute.xlu0 %1099
        %v1101 = vsel %vm760, %v1098, 0
        %v1103 = vsel %vm760, %v1100, 0
        %1105 = vmatprep.subr.mxu0 0.0
        %1106 = vmatpush1.xpose.msra.mxu0 %v1103
        %1107 = vmatprep.subr.mxu0 0.0
        %1108 = vmatpush1.xpose.msra.mxu0 0.0
        %1109 = vmatprep.subr.mxu0 0.0
        %1110 = vmatpush1.xpose.msra.mxu0 0.0
        %1111 = vmatprep.subr.mxu0 0.0
        %1112 = vmatpush1.xpose.msra.mxu0 0.0
        %1113 = vmatprep.subr.mxu0 0.0
        %1114 = vmatpush1.xpose.msra.mxu0 0.0
        %1115 = vmatprep.subr.mxu0 0.0
        %1116 = vmatpush1.xpose.msra.mxu0 0.0
        %1117 = vmatprep.subr.mxu0 0.0
        %1118 = vmatpush1.xpose.msra.mxu0 0.0
        %1119 = vmatprep.subr.mxu0 0.0
        %1120 = vmatpush1.xpose.msra.mxu0 0.0
        %1121 = vmatprep.subr.mxu0 0.0
        %1122 = vmatpush1.xpose.msra.mxu0 0.0
        %1123 = vmatprep.subr.mxu0 0.0
        %1124 = vmatpush1.xpose.msra.mxu0 0.0
        %1125 = vmatprep.subr.mxu0 0.0
        %1126 = vmatpush1.xpose.msra.mxu0 0.0
        %1127 = vmatprep.subr.mxu0 0.0
        %1128 = vmatpush1.xpose.msra.mxu0 0.0
        %1129 = vmatprep.subr.mxu0 0.0
        %1130 = vmatpush1.xpose.msra.mxu0 0.0
        %1131 = vmatprep.subr.mxu0 0.0
        %1132 = vmatpush1.xpose.msra.mxu0 0.0
        %1133 = vmatprep.subr.mxu0 0.0
        %1134 = vmatpush1.xpose.msra.mxu0 0.0
        %1135 = vmatprep.subr.mxu0 0.0
        %1136 = vmatpush1.xpose.msra.mxu0 0.0
        %1137 = vmatprep.subr.mxu0 0.0
        %1138 = vmatpush1.xpose.msra.mxu0 0.0
        %1139 = vmatprep.subr.mxu0 0.0
        %1140 = vmatpush1.xpose.msra.mxu0 0.0
        %1141 = vmatprep.subr.mxu0 0.0
        %1142 = vmatpush1.xpose.msra.mxu0 0.0
        %1143 = vmatprep.subr.mxu0 0.0
        %1144 = vmatpush1.xpose.msra.mxu0 0.0
        %1145 = vmatprep.subr.mxu0 0.0
        %1146 = vmatpush1.xpose.msra.mxu0 0.0
        %1147 = vmatprep.subr.mxu0 0.0
        %1148 = vmatpush1.xpose.msra.mxu0 0.0
        %1149 = vmatprep.subr.mxu0 0.0
        %1150 = vmatpush1.xpose.msra.mxu0 0.0
        %1151 = vmatprep.subr.mxu0 0.0
        %1152 = vmatpush1.xpose.msra.mxu0 0.0
        %1153 = vmatprep.subr.mxu0 0.0
        %1154 = vmatpush1.xpose.msra.mxu0 0.0
        %1155 = vmatprep.subr.mxu0 0.0
        %1156 = vmatpush1.xpose.msra.mxu0 0.0
        %1157 = vmatprep.subr.mxu0 0.0
        %1158 = vmatpush1.xpose.msra.mxu0 0.0
        %1159 = vmatprep.subr.mxu0 0.0
        %1160 = vmatpush1.xpose.msra.mxu0 0.0
        %1161 = vmatprep.subr.mxu0 0.0
        %1162 = vmatpush1.xpose.msra.mxu0 0.0
        %1163 = vmatprep.subr.mxu0 0.0
        %1164 = vmatpush1.xpose.msra.mxu0 0.0
        %1165 = vmatprep.subr.mxu0 0.0
        %1166 = vmatpush1.xpose.msra.mxu0 0.0
        %1167 = vmatprep.subr.mxu0 0.0
        %1168 = vmatpush1.xpose.msra.mxu0 0.0
        %1169 = vmatprep.mubr.f32.mxu0 0.0
        %1170 = vmatmul.mubr.f32.gmra.mrb[0].mxu0 %v1101
        %v1171 = vpop.f32.mrb[0].mxu0
        %v1172 = vadd.f32 0.0, %v1171
        %v1173 = vpop.f32.mrb[0].mxu0
        %1174 = vdwg.mxu0
        %v1175 = vmul.f32 %v1172, 0.35355338
        %v1176 = vadd.f32 %v1175, %v840
        %v1177 = vsel %vm760, %v1176, -inf
        %1178 = vmax.xlane.f32.xlu0 %v1177
        %v1179 = vpop.xlane.xlu0 %1178
        %v1180 = vsub.f32 %v1176, %v1179
        %v1181 = vmul.f32 %v1180, 1.442695
        %v1182 = vpow.pop %v1181
        %v1183 = vsel %vm760, %v1182, 0.0
        %1184 = vadd.xlane.f32.xlu0 %v1183
        %v1185 = vpop.xlane.xlu0 %1184
        %v1186 = vrcp.pop %v1185
        %v1187 = vmul.f32 %v1182, %v1186
        %1188 = vrot.lane.b32.xlu0 %v754, 48
        %v1189 = vpop.permute.xlu0 %1188
        %v1192 = vsel %vm760, %v1187, 0
        %1194 = vmatprep.subr.mxu0 0.0
        %1195 = vmatpush1.msra.mxu0 %v1189
        %1196 = vmatprep.subr.mxu0 0.0
        %1197 = vmatpush1.msra.mxu0 0.0
        %1198 = vmatprep.subr.mxu0 0.0
        %1199 = vmatpush1.msra.mxu0 0.0
        %1200 = vmatprep.subr.mxu0 0.0
        %1201 = vmatpush1.msra.mxu0 0.0
        %1202 = vmatprep.subr.mxu0 0.0
        %1203 = vmatpush1.msra.mxu0 0.0
        %1204 = vmatprep.subr.mxu0 0.0
        %1205 = vmatpush1.msra.mxu0 0.0
        %1206 = vmatprep.subr.mxu0 0.0
        %1207 = vmatpush1.msra.mxu0 0.0
        %1208 = vmatprep.subr.mxu0 0.0
        %1209 = vmatpush1.msra.mxu0 0.0
        %1210 = vmatprep.subr.mxu0 0.0
        %1211 = vmatpush1.msra.mxu0 0.0
        %1212 = vmatprep.subr.mxu0 0.0
        %1213 = vmatpush1.msra.mxu0 0.0
        %1214 = vmatprep.subr.mxu0 0.0
        %1215 = vmatpush1.msra.mxu0 0.0
        %1216 = vmatprep.subr.mxu0 0.0
        %1217 = vmatpush1.msra.mxu0 0.0
        %1218 = vmatprep.subr.mxu0 0.0
        %1219 = vmatpush1.msra.mxu0 0.0
        %1220 = vmatprep.subr.mxu0 0.0
        %1221 = vmatpush1.msra.mxu0 0.0
        %1222 = vmatprep.subr.mxu0 0.0
        %1223 = vmatpush1.msra.mxu0 0.0
        %1224 = vmatprep.subr.mxu0 0.0
        %1225 = vmatpush1.msra.mxu0 0.0
        %1226 = vmatprep.subr.mxu0 0.0
        %1227 = vmatpush1.msra.mxu0 0.0
        %1228 = vmatprep.subr.mxu0 0.0
        %1229 = vmatpush1.msra.mxu0 0.0
        %1230 = vmatprep.subr.mxu0 0.0
        %1231 = vmatpush1.msra.mxu0 0.0
        %1232 = vmatprep.subr.mxu0 0.0
        %1233 = vmatpush1.msra.mxu0 0.0
        %1234 = vmatprep.subr.mxu0 0.0
        %1235 = vmatpush1.msra.mxu0 0.0
        %1236 = vmatprep.subr.mxu0 0.0
        %1237 = vmatpush1.msra.mxu0 0.0
        %1238 = vmatprep.subr.mxu0 0.0
        %1239 = vmatpush1.msra.mxu0 0.0
        %1240 = vmatprep.subr.mxu0 0.0
        %1241 = vmatpush1.msra.mxu0 0.0
        %1242 = vmatprep.subr.mxu0 0.0
        %1243 = vmatpush1.msra.mxu0 0.0
        %1244 = vmatprep.subr.mxu0 0.0
        %1245 = vmatpush1.msra.mxu0 0.0
        %1246 = vmatprep.subr.mxu0 0.0
        %1247 = vmatpush1.msra.mxu0 0.0
        %1248 = vmatprep.subr.mxu0 0.0
        %1249 = vmatpush1.msra.mxu0 0.0
        %1250 = vmatprep.subr.mxu0 0.0
        %1251 = vmatpush1.msra.mxu0 0.0
        %1252 = vmatprep.subr.mxu0 0.0
        %1253 = vmatpush1.msra.mxu0 0.0
        %1254 = vmatprep.subr.mxu0 0.0
        %1255 = vmatpush1.msra.mxu0 0.0
        %1256 = vmatprep.subr.mxu0 0.0
        %1257 = vmatpush1.msra.mxu0 0.0
        %1258 = vmatprep.mubr.f32.mxu0 0.0
        %1259 = vmatmul.mubr.f32.gmra.mrb[0].mxu0 %v1192
        %v1260 = vpop.f32.mrb[0].mxu0
        %v1261 = vadd.f32 0.0, %v1260
        %v1262 = vpop.f32.mrb[0].mxu0
        %1263 = vdwg.mxu0
        %1264 = vrot.lane.b32.xlu0 %v754, 104
        %v1265 = vpop.permute.xlu0 %1264
        %1266 = vrot.lane.b32.xlu0 %v754, 72
        %v1267 = vpop.permute.xlu0 %1266
        %v1268 = vsel %vm760, %v1265, 0
        %v1270 = vsel %vm760, %v1267, 0
        %1272 = vmatprep.subr.mxu0 0.0
        %1273 = vmatpush1.xpose.msra.mxu0 %v1270
        %1274 = vmatprep.subr.mxu0 0.0
        %1275 = vmatpush1.xpose.msra.mxu0 0.0
        %1276 = vmatprep.subr.mxu0 0.0
        %1277 = vmatpush1.xpose.msra.mxu0 0.0
        %1278 = vmatprep.subr.mxu0 0.0
        %1279 = vmatpush1.xpose.msra.mxu0 0.0
        %1280 = vmatprep.subr.mxu0 0.0
        %1281 = vmatpush1.xpose.msra.mxu0 0.0
        %1282 = vmatprep.subr.mxu0 0.0
        %1283 = vmatpush1.xpose.msra.mxu0 0.0
        %1284 = vmatprep.subr.mxu0 0.0
        %1285 = vmatpush1.xpose.msra.mxu0 0.0
        %1286 = vmatprep.subr.mxu0 0.0
        %1287 = vmatpush1.xpose.msra.mxu0 0.0
        %1288 = vmatprep.subr.mxu0 0.0
        %1289 = vmatpush1.xpose.msra.mxu0 0.0
        %1290 = vmatprep.subr.mxu0 0.0
        %1291 = vmatpush1.xpose.msra.mxu0 0.0
        %1292 = vmatprep.subr.mxu0 0.0
        %1293 = vmatpush1.xpose.msra.mxu0 0.0
        %1294 = vmatprep.subr.mxu0 0.0
        %1295 = vmatpush1.xpose.msra.mxu0 0.0
        %1296 = vmatprep.subr.mxu0 0.0
        %1297 = vmatpush1.xpose.msra.mxu0 0.0
        %1298 = vmatprep.subr.mxu0 0.0
        %1299 = vmatpush1.xpose.msra.mxu0 0.0
        %1300 = vmatprep.subr.mxu0 0.0
        %1301 = vmatpush1.xpose.msra.mxu0 0.0
        %1302 = vmatprep.subr.mxu0 0.0
        %1303 = vmatpush1.xpose.msra.mxu0 0.0
        %1304 = vmatprep.subr.mxu0 0.0
        %1305 = vmatpush1.xpose.msra.mxu0 0.0
        %1306 = vmatprep.subr.mxu0 0.0
        %1307 = vmatpush1.xpose.msra.mxu0 0.0
        %1308 = vmatprep.subr.mxu0 0.0
        %1309 = vmatpush1.xpose.msra.mxu0 0.0
        %1310 = vmatprep.subr.mxu0 0.0
        %1311 = vmatpush1.xpose.msra.mxu0 0.0
        %1312 = vmatprep.subr.mxu0 0.0
        %1313 = vmatpush1.xpose.msra.mxu0 0.0
        %1314 = vmatprep.subr.mxu0 0.0
        %1315 = vmatpush1.xpose.msra.mxu0 0.0
        %1316 = vmatprep.subr.mxu0 0.0
        %1317 = vmatpush1.xpose.msra.mxu0 0.0
        %1318 = vmatprep.subr.mxu0 0.0
        %1319 = vmatpush1.xpose.msra.mxu0 0.0
        %1320 = vmatprep.subr.mxu0 0.0
        %1321 = vmatpush1.xpose.msra.mxu0 0.0
        %1322 = vmatprep.subr.mxu0 0.0
        %1323 = vmatpush1.xpose.msra.mxu0 0.0
        %1324 = vmatprep.subr.mxu0 0.0
        %1325 = vmatpush1.xpose.msra.mxu0 0.0
        %1326 = vmatprep.subr.mxu0 0.0
        %1327 = vmatpush1.xpose.msra.mxu0 0.0
        %1328 = vmatprep.subr.mxu0 0.0
        %1329 = vmatpush1.xpose.msra.mxu0 0.0
        %1330 = vmatprep.subr.mxu0 0.0
        %1331 = vmatpush1.xpose.msra.mxu0 0.0
        %1332 = vmatprep.subr.mxu0 0.0
        %1333 = vmatpush1.xpose.msra.mxu0 0.0
        %1334 = vmatprep.subr.mxu0 0.0
        %1335 = vmatpush1.xpose.msra.mxu0 0.0
        %1336 = vmatprep.mubr.f32.mxu0 0.0
        %1337 = vmatmul.mubr.f32.gmra.mrb[0].mxu0 %v1268
        %v1338 = vpop.f32.mrb[0].mxu0
        %v1339 = vadd.f32 0.0, %v1338
        %v1340 = vpop.f32.mrb[0].mxu0
        %1341 = vdwg.mxu0
        %v1342 = vmul.f32 %v1339, 0.35355338
        %v1343 = vadd.f32 %v1342, %v840
        %v1344 = vsel %vm760, %v1343, -inf
        %1345 = vmax.xlane.f32.xlu0 %v1344
        %v1346 = vpop.xlane.xlu0 %1345
        %v1347 = vsub.f32 %v1343, %v1346
        %v1348 = vmul.f32 %v1347, 1.442695
        %v1349 = vpow.pop %v1348
        %v1350 = vsel %vm760, %v1349, 0.0
        %1351 = vadd.xlane.f32.xlu0 %v1350
        %v1352 = vpop.xlane.xlu0 %1351
        %v1353 = vrcp.pop %v1352
        %v1354 = vmul.f32 %v1349, %v1353
        %1355 = vrot.lane.b32.xlu0 %v754, 40
        %v1356 = vpop.permute.xlu0 %1355
        %v1359 = vsel %vm760, %v1354, 0
        %1361 = vmatprep.subr.mxu0 0.0
        %1362 = vmatpush1.msra.mxu0 %v1356
        %1363 = vmatprep.subr.mxu0 0.0
        %1364 = vmatpush1.msra.mxu0 0.0
        %1365 = vmatprep.subr.mxu0 0.0
        %1366 = vmatpush1.msra.mxu0 0.0
        %1367 = vmatprep.subr.mxu0 0.0
        %1368 = vmatpush1.msra.mxu0 0.0
        %1369 = vmatprep.subr.mxu0 0.0
        %1370 = vmatpush1.msra.mxu0 0.0
        %1371 = vmatprep.subr.mxu0 0.0
        %1372 = vmatpush1.msra.mxu0 0.0
        %1373 = vmatprep.subr.mxu0 0.0
        %1374 = vmatpush1.msra.mxu0 0.0
        %1375 = vmatprep.subr.mxu0 0.0
        %1376 = vmatpush1.msra.mxu0 0.0
        %1377 = vmatprep.subr.mxu0 0.0
        %1378 = vmatpush1.msra.mxu0 0.0
        %1379 = vmatprep.subr.mxu0 0.0
        %1380 = vmatpush1.msra.mxu0 0.0
        %1381 = vmatprep.subr.mxu0 0.0
        %1382 = vmatpush1.msra.mxu0 0.0
        %1383 = vmatprep.subr.mxu0 0.0
        %1384 = vmatpush1.msra.mxu0 0.0
        %1385 = vmatprep.subr.mxu0 0.0
        %1386 = vmatpush1.msra.mxu0 0.0
        %1387 = vmatprep.subr.mxu0 0.0
        %1388 = vmatpush1.msra.mxu0 0.0
        %1389 = vmatprep.subr.mxu0 0.0
        %1390 = vmatpush1.msra.mxu0 0.0
        %1391 = vmatprep.subr.mxu0 0.0
        %1392 = vmatpush1.msra.mxu0 0.0
        %1393 = vmatprep.subr.mxu0 0.0
        %1394 = vmatpush1.msra.mxu0 0.0
        %1395 = vmatprep.subr.mxu0 0.0
        %1396 = vmatpush1.msra.mxu0 0.0
        %1397 = vmatprep.subr.mxu0 0.0
        %1398 = vmatpush1.msra.mxu0 0.0
        %1399 = vmatprep.subr.mxu0 0.0
        %1400 = vmatpush1.msra.mxu0 0.0
        %1401 = vmatprep.subr.mxu0 0.0
        %1402 = vmatpush1.msra.mxu0 0.0
        %1403 = vmatprep.subr.mxu0 0.0
        %1404 = vmatpush1.msra.mxu0 0.0
        %1405 = vmatprep.subr.mxu0 0.0
        %1406 = vmatpush1.msra.mxu0 0.0
        %1407 = vmatprep.subr.mxu0 0.0
        %1408 = vmatpush1.msra.mxu0 0.0
        %1409 = vmatprep.subr.mxu0 0.0
        %1410 = vmatpush1.msra.mxu0 0.0
        %1411 = vmatprep.subr.mxu0 0.0
        %1412 = vmatpush1.msra.mxu0 0.0
        %1413 = vmatprep.subr.mxu0 0.0
        %1414 = vmatpush1.msra.mxu0 0.0
        %1415 = vmatprep.subr.mxu0 0.0
        %1416 = vmatpush1.msra.mxu0 0.0
        %1417 = vmatprep.subr.mxu0 0.0
        %1418 = vmatpush1.msra.mxu0 0.0
        %1419 = vmatprep.subr.mxu0 0.0
        %1420 = vmatpush1.msra.mxu0 0.0
        %1421 = vmatprep.subr.mxu0 0.0
        %1422 = vmatpush1.msra.mxu0 0.0
        %1423 = vmatprep.subr.mxu0 0.0
        %1424 = vmatpush1.msra.mxu0 0.0
        %1425 = vmatprep.mubr.f32.mxu0 0.0
        %1426 = vmatmul.mubr.f32.gmra.mrb[0].mxu0 %v1359
        %v1427 = vpop.f32.mrb[0].mxu0
        %v1428 = vadd.f32 0.0, %v1427
        %v1429 = vpop.f32.mrb[0].mxu0
        %1430 = vdwg.mxu0
        %1432 = vrot.lane.b32.xlu0 %v1094, 8
        %v1433 = vpop.permute.xlu0 %1432
        %1436 = vrot.lane.b32.xlu0 %v1261, 16
        %v1437 = vpop.permute.xlu0 %1436
        %1440 = vrot.lane.b32.xlu0 %v1428, 24
        %v1441 = vpop.permute.xlu0 %1440
        %v1443 = vsel %vm760, %v927, %v1433
        %vm1444 = vcmask 130048
        %v1445 = vsel %vm1444, %v1443, %v1437
        %vm1446 = vcmask 195584
        %v1447 = vsel %vm1446, %v1445, %v1441
        %v1448 = vld [vmem:[%s604] sm:$0xff]
        %v1449 = vld [vmem:[%s604 + $0x8] sm:$0xff]
        %v1450 = vld [vmem:[%s604 + $0x10] sm:$0xff]
        %v1451 = vld [vmem:[%s604 + $0x18] sm:$0xff]
        %v1452 = vld [vmem:[%s607] sm:$0x1]
        %v1454 = vlaneseq
        %v1455 = vshrl.u32 %v1454, 7
        %v1456 = vsub.s32 0, %v1455
        %v1457 = vrot.slane %v1452, %v1456
        %v1460 = vsel %vm640, %v1447, 0
        %1462 = vmatprep.subr.mxu0 0.0
        %1463 = vmatpush1.msra.mxu0 %v1448
        %1464 = vmatprep.subr.mxu0 0.0
        %1465 = vmatpush1.msra.mxu0 %v1449
        %1466 = vmatprep.subr.mxu0 0.0
        %1467 = vmatpush1.msra.mxu0 %v1450
        %1468 = vmatprep.subr.mxu0 0.0
        %1469 = vmatpush1.msra.mxu0 %v1451
        %1470 = vmatprep.subr.mxu0 0.0
        %1471 = vmatpush1.msra.mxu0 0.0
        %1472 = vmatprep.subr.mxu0 0.0
        %1473 = vmatpush1.msra.mxu0 0.0
        %1474 = vmatprep.subr.mxu0 0.0
        %1475 = vmatpush1.msra.mxu0 0.0
        %1476 = vmatprep.subr.mxu0 0.0
        %1477 = vmatpush1.msra.mxu0 0.0
        %1478 = vmatprep.subr.mxu0 0.0
        %1479 = vmatpush1.msra.mxu0 0.0
        %1480 = vmatprep.subr.mxu0 0.0
        %1481 = vmatpush1.msra.mxu0 0.0
        %1482 = vmatprep.subr.mxu0 0.0
        %1483 = vmatpush1.msra.mxu0 0.0
        %1484 = vmatprep.subr.mxu0 0.0
        %1485 = vmatpush1.msra.mxu0 0.0
        %1486 = vmatprep.subr.mxu0 0.0
        %1487 = vmatpush1.msra.mxu0 0.0
        %1488 = vmatprep.subr.mxu0 0.0
        %1489 = vmatpush1.msra.mxu0 0.0
        %1490 = vmatprep.subr.mxu0 0.0
        %1491 = vmatpush1.msra.mxu0 0.0
        %1492 = vmatprep.subr.mxu0 0.0
        %1493 = vmatpush1.msra.mxu0 0.0
        %1494 = vmatprep.subr.mxu0 0.0
        %1495 = vmatpush1.msra.mxu0 0.0
        %1496 = vmatprep.subr.mxu0 0.0
        %1497 = vmatpush1.msra.mxu0 0.0
        %1498 = vmatprep.subr.mxu0 0.0
        %1499 = vmatpush1.msra.mxu0 0.0
        %1500 = vmatprep.subr.mxu0 0.0
        %1501 = vmatpush1.msra.mxu0 0.0
        %1502 = vmatprep.subr.mxu0 0.0
        %1503 = vmatpush1.msra.mxu0 0.0
        %1504 = vmatprep.subr.mxu0 0.0
        %1505 = vmatpush1.msra.mxu0 0.0
        %1506 = vmatprep.subr.mxu0 0.0
        %1507 = vmatpush1.msra.mxu0 0.0
        %1508 = vmatprep.subr.mxu0 0.0
        %1509 = vmatpush1.msra.mxu0 0.0
        %1510 = vmatprep.subr.mxu0 0.0
        %1511 = vmatpush1.msra.mxu0 0.0
        %1512 = vmatprep.subr.mxu0 0.0
        %1513 = vmatpush1.msra.mxu0 0.0
        %1514 = vmatprep.subr.mxu0 0.0
        %1515 = vmatpush1.msra.mxu0 0.0
        %1516 = vmatprep.subr.mxu0 0.0
        %1517 = vmatpush1.msra.mxu0 0.0
        %1518 = vmatprep.subr.mxu0 0.0
        %1519 = vmatpush1.msra.mxu0 0.0
        %1520 = vmatprep.subr.mxu0 0.0
        %1521 = vmatpush1.msra.mxu0 0.0
        %1522 = vmatprep.subr.mxu0 0.0
        %1523 = vmatpush1.msra.mxu0 0.0
        %1524 = vmatprep.subr.mxu0 0.0
        %1525 = vmatpush1.msra.mxu0 0.0
        %1526 = vmatprep.mubr.f32.mxu0 0.0
        %1527 = vmatmul.mubr.f32.gmra.mrb[0].mxu0 %v1460
        %v1528 = vpop.f32.mrb[0].mxu0
        %v1529 = vadd.f32 %v1457, %v1528
        %v1530 = vpop.f32.mrb[0].mxu0
        %1531 = vdwg.mxu0
        %v1532 = vadd.f32 %v635, %v1529
        %v1533 = vsel %vm640, %v1532, 0.0
        %1534 = vadd.xlane.f32.xlu0 %v1533
        %v1535 = vpop.xlane.xlu0 %1534
        %v1536 = vmul.f32 %v1535, %v644
        %v1537 = vsub.f32 %v1532, %v1536
        %v1538 = vmul.f32 %v1537, %v1537
        %v1539 = vsel %vm640, %v1538, 0.0
        %1540 = vadd.xlane.f32.xlu0 %v1539
        %v1541 = vpop.xlane.xlu0 %1540
        %v1542 = vmul.f32 %v1541, %v651
        %v1543 = vrsqrt.pop %v1542
        %v1544 = vmul.f32 %v1542, %v1543
        %vm1545 = vcmp.eq.f32.partialorder %v1542, inf
        %v1546 = vsel %vm1545, %v1542, %v1544
        %vm1547 = vcmp.eq.f32.partialorder %v1542, 0.0
        %v1548 = vand.u32 %v1542, 2147483648
        %v1549 = vsel %vm1547, %v1548, %v1546
        %v1550 = vlaneseq
        %v1551 = vshrl.u32 %v1550, 7
        %v1552 = vsub.s32 2, %v1551
        %v1553 = vrot.slane %v639, %v1552
        %v1554 = vmul.f32 %v1553, %v1537
        %v1555 = vadd.f32 %v1549, 1e-06
        %v1556 = vrcp.pop %v1555
        %v1557 = vmul.f32 %v1554, %v1556
        %v1558 = vlaneseq
        %v1559 = vshrl.u32 %v1558, 7
        %v1560 = vsub.s32 3, %v1559
        %v1561 = vrot.slane %v639, %v1560
        %v1562 = vadd.f32 %v1557, %v1561
        %v1563 = vld [vmem:[%s612] sm:$0xff]
        %v1564 = vld [vmem:[%s612 + $0x8] sm:$0xff]
        %v1565 = vld [vmem:[%s612 + $0x10] sm:$0xff]
        %v1566 = vld [vmem:[%s612 + $0x18] sm:$0xff]
        %v1567 = vld [vmem:[%s615] sm:$0x1]
        %v1569 = vlaneseq
        %v1570 = vshrl.u32 %v1569, 7
        %v1571 = vsub.s32 0, %v1570
        %v1572 = vrot.slane %v1567, %v1571
        %v1575 = vsel %vm640, %v1562, 0
        %1577 = vmatprep.subr.mxu0 0.0
        %1578 = vmatpush1.msra.mxu0 %v1563
        %1579 = vmatprep.subr.mxu0 0.0
        %1580 = vmatpush1.msra.mxu0 %v1564
        %1581 = vmatprep.subr.mxu0 0.0
        %1582 = vmatpush1.msra.mxu0 %v1565
        %1583 = vmatprep.subr.mxu0 0.0
        %1584 = vmatpush1.msra.mxu0 %v1566
        %1585 = vmatprep.subr.mxu0 0.0
        %1586 = vmatpush1.msra.mxu0 0.0
        %1587 = vmatprep.subr.mxu0 0.0
        %1588 = vmatpush1.msra.mxu0 0.0
        %1589 = vmatprep.subr.mxu0 0.0
        %1590 = vmatpush1.msra.mxu0 0.0
        %1591 = vmatprep.subr.mxu0 0.0
        %1592 = vmatpush1.msra.mxu0 0.0
        %1593 = vmatprep.subr.mxu0 0.0
        %1594 = vmatpush1.msra.mxu0 0.0
        %1595 = vmatprep.subr.mxu0 0.0
        %1596 = vmatpush1.msra.mxu0 0.0
        %1597 = vmatprep.subr.mxu0 0.0
        %1598 = vmatpush1.msra.mxu0 0.0
        %1599 = vmatprep.subr.mxu0 0.0
        %1600 = vmatpush1.msra.mxu0 0.0
        %1601 = vmatprep.subr.mxu0 0.0
        %1602 = vmatpush1.msra.mxu0 0.0
        %1603 = vmatprep.subr.mxu0 0.0
        %1604 = vmatpush1.msra.mxu0 0.0
        %1605 = vmatprep.subr.mxu0 0.0
        %1606 = vmatpush1.msra.mxu0 0.0
        %1607 = vmatprep.subr.mxu0 0.0
        %1608 = vmatpush1.msra.mxu0 0.0
        %1609 = vmatprep.subr.mxu0 0.0
        %1610 = vmatpush1.msra.mxu0 0.0
        %1611 = vmatprep.subr.mxu0 0.0
        %1612 = vmatpush1.msra.mxu0 0.0
        %1613 = vmatprep.subr.mxu0 0.0
        %1614 = vmatpush1.msra.mxu0 0.0
        %1615 = vmatprep.subr.mxu0 0.0
        %1616 = vmatpush1.msra.mxu0 0.0
        %1617 = vmatprep.subr.mxu0 0.0
        %1618 = vmatpush1.msra.mxu0 0.0
        %1619 = vmatprep.subr.mxu0 0.0
        %1620 = vmatpush1.msra.mxu0 0.0
        %1621 = vmatprep.subr.mxu0 0.0
        %1622 = vmatpush1.msra.mxu0 0.0
        %1623 = vmatprep.subr.mxu0 0.0
        %1624 = vmatpush1.msra.mxu0 0.0
        %1625 = vmatprep.subr.mxu0 0.0
        %1626 = vmatpush1.msra.mxu0 0.0
        %1627 = vmatprep.subr.mxu0 0.0
        %1628 = vmatpush1.msra.mxu0 0.0
        %1629 = vmatprep.subr.mxu0 0.0
        %1630 = vmatpush1.msra.mxu0 0.0
        %1631 = vmatprep.subr.mxu0 0.0
        %1632 = vmatpush1.msra.mxu0 0.0
        %1633 = vmatprep.subr.mxu0 0.0
        %1634 = vmatpush1.msra.mxu0 0.0
        %1635 = vmatprep.subr.mxu0 0.0
        %1636 = vmatpush1.msra.mxu0 0.0
        %1637 = vmatprep.subr.mxu0 0.0
        %1638 = vmatpush1.msra.mxu0 0.0
        %1639 = vmatprep.subr.mxu0 0.0
        %1640 = vmatpush1.msra.mxu0 0.0
        %1641 = vmatprep.mubr.f32.mxu0 0.0
        %1642 = vmatmul.mubr.f32.gmra.mrb[0].mxu0 %v1575
        %v1643 = vpop.f32.mrb[0].mxu0
        %v1644 = vadd.f32 %v1572, %v1643
        %v1645 = vpop.f32.mrb[0].mxu0
        %1646 = vdwg.mxu0
        %v1647 = vmax.f32 %v1644, 0.0
        %v1648 = vld [vmem:[%s620] sm:$0xff]
        %v1649 = vld [vmem:[%s620 + $0x8] sm:$0xff]
        %v1650 = vld [vmem:[%s620 + $0x10] sm:$0xff]
        %v1651 = vld [vmem:[%s620 + $0x18] sm:$0xff]
        %v1652 = vld [vmem:[%s620 + $0x20] sm:$0xff]
        %v1653 = vld [vmem:[%s620 + $0x28] sm:$0xff]
        %v1654 = vld [vmem:[%s620 + $0x30] sm:$0xff]
        %v1655 = vld [vmem:[%s620 + $0x38] sm:$0xff]
        %v1656 = vld [vmem:[%s623] sm:$0x1]
        %v1658 = vlaneseq
        %v1659 = vshrl.u32 %v1658, 7
        %v1660 = vsub.s32 0, %v1659
        %v1661 = vrot.slane %v1656, %v1660
        %vm1663 = vcmask 523264
        %v1665 = vsel %vm1663, %v1647, 0
        %1667 = vmatprep.subr.mxu0 0.0
        %1668 = vmatpush1.msra.mxu0 %v1648
        %1669 = vmatprep.subr.mxu0 0.0
        %1670 = vmatpush1.msra.mxu0 %v1649
        %1671 = vmatprep.subr.mxu0 0.0
        %1672 = vmatpush1.msra.mxu0 %v1650
        %1673 = vmatprep.subr.mxu0 0.0
        %1674 = vmatpush1.msra.mxu0 %v1651
        %1675 = vmatprep.subr.mxu0 0.0
        %1676 = vmatpush1.msra.mxu0 %v1652
        %1677 = vmatprep.subr.mxu0 0.0
        %1678 = vmatpush1.msra.mxu0 %v1653
        %1679 = vmatprep.subr.mxu0 0.0
        %1680 = vmatpush1.msra.mxu0 %v1654
        %1681 = vmatprep.subr.mxu0 0.0
        %1682 = vmatpush1.msra.mxu0 %v1655
        %1683 = vmatprep.subr.mxu0 0.0
        %1684 = vmatpush1.msra.mxu0 0.0
        %1685 = vmatprep.subr.mxu0 0.0
        %1686 = vmatpush1.msra.mxu0 0.0
        %1687 = vmatprep.subr.mxu0 0.0
        %1688 = vmatpush1.msra.mxu0 0.0
        %1689 = vmatprep.subr.mxu0 0.0
        %1690 = vmatpush1.msra.mxu0 0.0
        %1691 = vmatprep.subr.mxu0 0.0
        %1692 = vmatpush1.msra.mxu0 0.0
        %1693 = vmatprep.subr.mxu0 0.0
        %1694 = vmatpush1.msra.mxu0 0.0
        %1695 = vmatprep.subr.mxu0 0.0
        %1696 = vmatpush1.msra.mxu0 0.0
        %1697 = vmatprep.subr.mxu0 0.0
        %1698 = vmatpush1.msra.mxu0 0.0
        %1699 = vmatprep.subr.mxu0 0.0
        %1700 = vmatpush1.msra.mxu0 0.0
        %1701 = vmatprep.subr.mxu0 0.0
        %1702 = vmatpush1.msra.mxu0 0.0
        %1703 = vmatprep.subr.mxu0 0.0
        %1704 = vmatpush1.msra.mxu0 0.0
        %1705 = vmatprep.subr.mxu0 0.0
        %1706 = vmatpush1.msra.mxu0 0.0
        %1707 = vmatprep.subr.mxu0 0.0
        %1708 = vmatpush1.msra.mxu0 0.0
        %1709 = vmatprep.subr.mxu0 0.0
        %1710 = vmatpush1.msra.mxu0 0.0
        %1711 = vmatprep.subr.mxu0 0.0
        %1712 = vmatpush1.msra.mxu0 0.0
        %1713 = vmatprep.subr.mxu0 0.0
        %1714 = vmatpush1.msra.mxu0 0.0
        %1715 = vmatprep.subr.mxu0 0.0
        %1716 = vmatpush1.msra.mxu0 0.0
        %1717 = vmatprep.subr.mxu0 0.0
        %1718 = vmatpush1.msra.mxu0 0.0
        %1719 = vmatprep.subr.mxu0 0.0
        %1720 = vmatpush1.msra.mxu0 0.0
        %1721 = vmatprep.subr.mxu0 0.0
        %1722 = vmatpush1.msra.mxu0 0.0
        %1723 = vmatprep.subr.mxu0 0.0
        %1724 = vmatpush1.msra.mxu0 0.0
        %1725 = vmatprep.subr.mxu0 0.0
        %1726 = vmatpush1.msra.mxu0 0.0
        %1727 = vmatprep.subr.mxu0 0.0
        %1728 = vmatpush1.msra.mxu0 0.0
        %1729 = vmatprep.subr.mxu0 0.0
        %1730 = vmatpush1.msra.mxu0 0.0
        %1731 = vmatprep.mubr.f32.mxu0 0.0
        %1732 = vmatmul.mubr.f32.gmra.mrb[0].mxu0 %v1665
        %v1733 = vpop.f32.mrb[0].mxu0
        %v1734 = vadd.f32 %v1661, %v1733
        %v1735 = vpop.f32.mrb[0].mxu0
        %1736 = vdwg.mxu0
        %v1737 = vadd.f32 %v1532, %v1734
        %1738 = vst.msk [vmem:[%s591] sm:$0xff] %vm640, %v1737
        %p1739 = scmp.eq.s32.totalorder %s37, 1
        // Predicated region
        $region81: #{tpu_custom_call.1} parent=67 // pred_check
          %p1740 = pneg %p1739
        $region82: #{tpu_custom_call.1} parent=67 // pred_check_branch
          %1742 = sbr.rel (%p1740) target = $region84
        $region83: #{tpu_custom_call.1} parent=67 // pred_region
          %v1743 = vld [vmem:[%s11] sm:$0x1]
          %v1744 = vld [vmem:[%s11 + $0x1] sm:$0x1]
          %v1745 = vsel %vm640, %v1737, 0.0
          %1746 = vadd.xlane.f32.xlu0 %v1745
          %v1747 = vpop.xlane.xlu0 %1746
          %v1748 = vmul.f32 %v1747, %v644
          %v1749 = vsub.f32 %v1737, %v1748
          %v1750 = vmul.f32 %v1749, %v1749
          %v1751 = vsel %vm640, %v1750, 0.0
          %1752 = vadd.xlane.f32.xlu0 %v1751
          %v1753 = vpop.xlane.xlu0 %1752
          %v1754 = vmul.f32 %v1753, %v651
          %v1755 = vrsqrt.pop %v1754
          %v1756 = vmul.f32 %v1754, %v1755
          %vm1757 = vcmp.eq.f32.partialorder %v1754, inf
          %v1758 = vsel %vm1757, %v1754, %v1756
          %vm1759 = vcmp.eq.f32.partialorder %v1754, 0.0
          %v1760 = vand.u32 %v1754, 2147483648
          %v1761 = vsel %vm1759, %v1760, %v1758
          %v1762 = vlaneseq
          %v1763 = vshrl.u32 %v1762, 7
          %v1764 = vsub.s32 0, %v1763
          %v1765 = vrot.slane %v1743, %v1764
          %v1766 = vmul.f32 %v1765, %v1749
          %v1767 = vadd.f32 %v1761, 1e-06
          %v1768 = vrcp.pop %v1767
          %v1769 = vmul.f32 %v1766, %v1768
          %v1770 = vlaneseq
          %v1771 = vshrl.u32 %v1770, 7
          %v1772 = vsub.s32 0, %v1771
          %v1773 = vrot.slane %v1744, %v1772
          %v1774 = vadd.f32 %v1769, %v1773
          %1775 = vst.msk [vmem:[%s591] sm:$0xff] %vm640, %v1774
        $region84: #{tpu_custom_call.1} parent=67 // pred_fallthru
          _
        %s1776 = sand.u32 %s359, 1
        %s1777 = scalar_lea.sflag [#allocation4], %s1776
        %s1778 = sand.u32 %s359, 1
        %s1779 = smul.addr %s1778, 8
        %s1780 = scalar_lea.vmem [#allocation7], %s1779
        // Predicated region
        $region85: #{tpu_custom_call.1} parent=67 // pred_check
          %p1781 = pneg %p369
        $region86: #{tpu_custom_call.1} parent=67 // pred_check_branch
          %1783 = sbr.rel (%p1781) target = $region88
        $region87: #{tpu_custom_call.1} parent=67 // pred_region
          %s1785 = ssub.s32 128, 128
          %1786 = vsyncadd %s1777, %s1785
          %s1787 = smul.addr %s36, 128
          %s1788 = scalar_lea.hbm %s12, %s1787
          %s1790 = sshll.u32 %s1780, 4
          %s1791 = int_to_ptr.vmem [resolvable:$true] %s1790
          %1793 = dma.vmem_to_hbm [thread:$0]  %s1791, 128, %s1788, %s1777
        $region88: #{tpu_custom_call.1} parent=67 // pred_fallthru
          _
      $region68: #{tpu_custom_call.1} parent=5 // pred_fallthru
        _
      %p1794 = scmp.le.s32.totalorder 2, %s27
      // Predicated region
      $region89: #{tpu_custom_call.1} parent=5 // pred_check
        %p1795 = pneg %p1794
      $region90: #{tpu_custom_call.1} parent=5 // pred_check_branch
        %1797 = sbr.rel (%p1795) target = $region92
      $region91: #{tpu_custom_call.1} parent=5 // pred_region
        %s1798 = ssub.s32 %s27, 2
        // Predicated region
        $region93: #{tpu_custom_call.1} parent=91 // pred_check
          %p1799 = pneg %p375
        $region94: #{tpu_custom_call.1} parent=91 // pred_check_branch
          %1801 = sbr.rel (%p1799) target = $region96
        $region95: #{tpu_custom_call.1} parent=91 // pred_region
          %s1802 = sand.u32 %s360, 1
          %s1803 = scalar_lea.sflag [#allocation4], %s1802
          %s1804 = sand.u32 %s360, 1
          %s1805 = smul.addr %s1804, 8
          %s1806 = scalar_lea.vmem [#allocation7], %s1805
          %1807 = dma.done %s1803, 128
        $region96: #{tpu_custom_call.1} parent=91 // pred_fallthru
          _
      $region92: #{tpu_custom_call.1} parent=5 // pred_fallthru
        _
    $region6: #{tpu_custom_call.1} parent=1 // loop_footer
      %s31 = sadd.s32 1, %s27
    $region7: #{tpu_custom_call.1} parent=1 // loop_footer_branch
      %26 = sbr.rel target = $region3
    $region8: #{tpu_custom_call.1} parent=1 // loop_exit
      _
    %1808 = vsyncpa [#allocation3], 1
    %s1809 = scalar_lea.sflag [#allocation3], 1
    %1810 = vsyncpa %s1809, 1
    %1811 = vsyncpa [#allocation6], 1
    %s1812 = scalar_lea.sflag [#allocation6], 1
    %1813 = vsyncpa %s1812, 1
    %1814 = vsyncpa [#allocation4], 1
    %s1815 = scalar_lea.sflag [#allocation4], 1
    %1816 = vsyncpa %s1815, 1

</llo_original>
